<compile_context>
chip_gen: v7x
topology: tpu7x:2x2x1
jax: 0.10.0
libtpu: 0.0.40
codegen_flags: <defaults>
</compile_context>

<pallas_src>
import functools
import math

import jax
import jax.numpy as jnp
from jax import lax
from jax.experimental import pallas as pl
from jax.experimental.pallas import tpu as pltpu

MAX_VAL = 1000000000000.0  # 1e12, matches the PyTorch module

_LANE = 128
_DEFAULT_BLOCK_Q = 128
_DEFAULT_BLOCK_K = 128
_VMEM_LIMIT = 32 * 1024 * 1024  # safe on v5e/v6e/v7x; tiles here use far less


# ------------------------------ helpers ------------------------------------ #
def _pad_last2(x, d2, d3):
    """Zero-pad the last two dims of x up to (d2, d3)."""
    pads = [(0, 0)] * x.ndim
    pads[-2] = (0, d2 - x.shape[-2])
    pads[-1] = (0, d3 - x.shape[-1])
    if all(p == (0, 0) for p in pads):
        return x
    return jnp.pad(x, pads)


def _masked_scores(q_ref, k_ref, mask_ref, mod_ref, *, use_mod, use_window,
                   global_num, window_size, scale, block_q, block_k,
                   compute_dtype):
    """Shared score-tile computation: QK^T * scale, head-gated reweight, mask."""
    h = pl.program_id(1)
    qi = pl.program_id(2)
    ki = pl.program_id(3)

    q = q_ref[0, 0].astype(compute_dtype)          # (bq, Dkp)
    k = k_ref[0, 0].astype(compute_dtype)          # (bk, Dkp)
    # Contract the head dims of Q and K directly (no materialized K^T).
    s = lax.dot_general(q, k, (((1,), (1,)), ((), ())),
                        preferred_element_type=jnp.float32)
    s = s * jnp.float32(scale)

    if use_mod:
        # 'initial' locker: local heads multiply scores by a sigmoid table.
        is_local = h >= global_num
        s = s * jnp.where(is_local, mod_ref[0], jnp.float32(1.0))

    rows = qi * block_q + lax.broadcasted_iota(jnp.int32, (block_q, block_k), 0)
    cols = ki * block_k + lax.broadcasted_iota(jnp.int32, (block_q, block_k), 1)

    keep = mask_ref[0, 0].astype(jnp.int32) != 0
    if use_window:
        # 'win' locker: local heads additionally restricted to |i-j| <= window.
        win_ok = jnp.abs(cols - rows) <= window_size
        keep = keep & (win_ok | (h < global_num))
    s = jnp.where(keep, s, jnp.float32(-MAX_VAL))
    return s, cols


# --------------------------- flash attention kernel ------------------------ #
def _flash_kernel(q_ref, k_ref, v_ref, mask_ref, *rest, use_mod, use_window,
                  global_num, window_size, seq_len, padded_cols, scale,
                  block_q, block_k, compute_dtype):
    if use_mod:
        mod_ref, o_ref, lse_ref, m_scr, l_scr, acc_scr = rest
    else:
        mod_ref = None
        o_ref, lse_ref, m_scr, l_scr, acc_scr = rest

    ki = pl.program_id(3)

    @pl.when(ki == 0)
    def _init():
        m_scr[...] = jnp.full_like(m_scr, -jnp.inf)
        l_scr[...] = jnp.zeros_like(l_scr)
        acc_scr[...] = jnp.zeros_like(acc_scr)

    s, cols = _masked_scores(
        q_ref, k_ref, mask_ref, mod_ref,
        use_mod=use_mod, use_window=use_window, global_num=global_num,
        window_size=window_size, scale=scale, block_q=block_q,
        block_k=block_k, compute_dtype=compute_dtype)

    # Online (flash) softmax update, all in f32.
    m_prev = m_scr[...]
    m_new = jnp.maximum(m_prev, jnp.max(s, axis=-1, keepdims=True))
    alpha = jnp.exp(m_prev - m_new)

    p = jnp.exp(s - m_new)
    if padded_cols:
        # Drop padded key columns exactly so even fully-masked rows normalise
        # over the true sequence length (matches masked_fill + softmax).
        p = jnp.where(cols < seq_len, p, jnp.float32(0.0))

    v = v_ref[0, 0].astype(compute_dtype)
    l_scr[...] = alpha * l_scr[...] + jnp.sum(p, axis=-1, keepdims=True)
    acc_scr[...] = alpha * acc_scr[...] + jnp.dot(
        p.astype(compute_dtype), v, preferred_element_type=jnp.float32)
    m_scr[...] = m_new

    @pl.when(ki == pl.num_programs(3) - 1)
    def _finalize():
        # 1/l normalisation deferred to here (once per query tile) -> cheap.
        out = acc_scr[...] / l_scr[...]
        o_ref[0, 0] = out.astype(o_ref.dtype)
        lse_ref[0, 0] = m_scr[...] + jnp.log(l_scr[...])


# ---------------- optional probability-matrix reconstruction --------------- #
def _probs_kernel(q_ref, k_ref, mask_ref, *rest, use_mod, use_window,
                  global_num, window_size, seq_len, padded_cols, scale,
                  block_q, block_k, compute_dtype):
    if use_mod:
        mod_ref, lse_ref, p_ref = rest
    else:
        mod_ref = None
        lse_ref, p_ref = rest

    s, cols = _masked_scores(
        q_ref, k_ref, mask_ref, mod_ref,
        use_mod=use_mod, use_window=use_window, global_num=global_num,
        window_size=window_size, scale=scale, block_q=block_q,
        block_k=block_k, compute_dtype=compute_dtype)

    p = jnp.exp(s - lse_ref[0, 0])                 # (bq, bk) / broadcast (bq,1)
    if padded_cols:
        p = jnp.where(cols < seq_len, p, jnp.float32(0.0))
    p_ref[0, 0] = p.astype(p_ref.dtype)


# ------------------------------ pallas wrapper ------------------------------ #
def _attention_pallas(query, key, value, mask_b1ll, mod_lll=None, *,
                      use_window=False, global_num=0, window_size=0,
                      block_q=_DEFAULT_BLOCK_Q, block_k=_DEFAULT_BLOCK_K,
                      compute_dtype=jnp.float32, return_p_attn=False):
    """query/key/value: (B,H,L,Dk); mask: (B,1,L,L); mod: (local_num,L,L)|None."""
    B, H, L, Dk = query.shape
    use_mod = mod_lll is not None

    tile = max(block_q, block_k)
    assert tile % block_q == 0 and tile % block_k == 0
    Lp = pl.cdiv(L, tile) * tile                    # seq padded to tile multiple
    Dkp = pl.cdiv(Dk, _LANE) * _LANE                # lane-dense head dim

    q_p = _pad_last2(query, Lp, Dkp)
    k_p = _pad_last2(key, Lp, Dkp)
    v_p = _pad_last2(value, Lp, Dkp)
    mask_p = _pad_last2(mask_b1ll.astype(jnp.int8), Lp, Lp)   # int8: 4x less DMA
    mod_p = _pad_last2(mod_lll.astype(jnp.float32), Lp, Lp) if use_mod else None

    nq, nk = Lp // block_q, Lp // block_k
    grid = (B, H, nq, nk)

    q_spec = pl.BlockSpec((1, 1, block_q, Dkp), lambda b, h, qi, ki: (b, h, qi, 0))
    k_spec = pl.BlockSpec((1, 1, block_k, Dkp), lambda b, h, qi, ki: (b, h, ki, 0))
    v_spec = pl.BlockSpec((1, 1, block_k, Dkp), lambda b, h, qi, ki: (b, h, ki, 0))
    # Mask is (B, 1, Lp, Lp): never broadcast across heads in HBM.
    mask_spec = pl.BlockSpec((1, 1, block_q, block_k),
                             lambda b, h, qi, ki: (b, 0, qi, ki))
    o_spec = pl.BlockSpec((1, 1, block_q, Dkp), lambda b, h, qi, ki: (b, h, qi, 0))
    lse_spec = pl.BlockSpec((1, 1, block_q, 1), lambda b, h, qi, ki: (b, h, qi, 0))

    in_specs = [q_spec, k_spec, v_spec, mask_spec]
    inputs = [q_p, k_p, v_p, mask_p]
    mod_spec = None
    if use_mod:
        g = global_num
        # Only local heads have a real table entry; clamp global heads to 0 and
        # gate the multiply inside the kernel on the head index.
        mod_spec = pl.BlockSpec(
            (1, block_q, block_k),
            lambda b, h, qi, ki: (jnp.maximum(h - g, 0), qi, ki))
        in_specs.append(mod_spec)
        inputs.append(mod_p)

    common = dict(use_mod=use_mod, use_window=use_window, global_num=global_num,
                  window_size=window_size, seq_len=L, padded_cols=(Lp > L),
                  scale=1.0 / math.sqrt(Dk), block_q=block_q, block_k=block_k,
                  compute_dtype=compute_dtype)

    flash = functools.partial(_flash_kernel, **common)
    out, lse = pl.pallas_call(
        flash,
        out_shape=(jax.ShapeDtypeStruct((B, H, Lp, Dkp), query.dtype),
                   jax.ShapeDtypeStruct((B, H, Lp, 1), jnp.float32)),
        grid_spec=pltpu.PrefetchScalarGridSpec(
            num_scalar_prefetch=0,
            grid=grid,
            in_specs=in_specs,
            out_specs=(o_spec, lse_spec),
            scratch_shapes=[pltpu.VMEM((block_q, 1), jnp.float32),     # m
                            pltpu.VMEM((block_q, 1), jnp.float32),     # l
                            pltpu.VMEM((block_q, Dkp), jnp.float32)]), # acc
        compiler_params=pltpu.CompilerParams(
            dimension_semantics=("parallel", "parallel", "parallel", "arbitrary"),
            vmem_limit_bytes=_VMEM_LIMIT),
    )(*inputs)

    out = out[:, :, :L, :Dk]

    if not return_p_attn:
        return out, None

    # Optional second kernel: reconstruct the full probability matrix from the
    # per-row log-sum-exp (only when the caller actually needs p_attn).
    p_spec = pl.BlockSpec((1, 1, block_q, block_k),
                          lambda b, h, qi, ki: (b, h, qi, ki))
    probs = functools.partial(_probs_kernel, **common)
    p_in_specs = [q_spec, k_spec, mask_spec]
    p_inputs = [q_p, k_p, mask_p]
    if use_mod:
        p_in_specs.append(mod_spec)
        p_inputs.append(mod_p)
    p_in_specs.append(lse_spec)
    p_inputs.append(lse)

    p = pl.pallas_call(
        probs,
        out_shape=jax.ShapeDtypeStruct((B, H, Lp, Lp), jnp.float32),
        grid_spec=pltpu.PrefetchScalarGridSpec(
            num_scalar_prefetch=0,
            grid=grid,
            in_specs=p_in_specs,
            out_specs=p_spec),
        compiler_params=pltpu.CompilerParams(
            dimension_semantics=("parallel", "parallel", "parallel", "parallel"),
            vmem_limit_bytes=_VMEM_LIMIT),
    )(*p_inputs)
    return out, p[:, :, :L, :L]


# ------------------------------ glue / module ------------------------------ #
class AttentionParams:
    """Deterministic parameter container mirroring the PyTorch __init__."""

    def __init__(self, n, d, d_k, num_attention_heads, local_num,
                 locker_type="vanilla", window_size=2, sigma=1.0, alpha=1.0):
        self.n = n
        self.d = d
        self.d_k = d_k
        self.h = d // d_k
        self.locker_type = locker_type
        self.global_num = num_attention_heads - local_num
        self.local_num = local_num
        self.window_size = window_size

        pos_l = jnp.arange(n)[:, None]
        pos_r = jnp.arange(n)[None, :]
        self.distance_rel = pos_r - pos_l + n - 1       # index into (2n-1) table
        self.distance_abs = jnp.abs(pos_r - pos_l)

        # InitialAttention.rel_pos_score weight: deterministic gaussian init.
        x = jnp.arange(2 * n - 1, dtype=jnp.float32) - n
        init_val = alpha * jnp.exp(-((x / sigma) ** 2) / 2.0)
        self.rel_pos_score_weight = jnp.tile(init_val[:, None], (1, max(local_num, 1)))


def attention_forward(params, query, key, value, mask=None, *,
                      return_p_attn=True, compute_dtype=jnp.float32,
                      block_q=_DEFAULT_BLOCK_Q, block_k=_DEFAULT_BLOCK_K):
    """Mirrors Attention.forward (dropout = identity / eval mode).

    query/key/value : (B, H, L, Dk) float32
    mask            : (B, 1, L, L) (1 = attend, 0 = masked) or None
    return_p_attn   : False skips the (B,H,L,L) probability writeback (the
                      largest HBM cost) and returns None in its place.
    compute_dtype   : MXU operand dtype (jnp.bfloat16 recommended on v6e/v7x).
    Returns (output, p_attn) with the same structure as the PyTorch module.
    """
    B, H, L, Dk = query.shape
    g, loc = params.global_num, params.local_num
    lt = params.locker_type

    if mask is None:
        mask = jnp.ones((B, 1, L, L), jnp.int8)

    mod_lll = None
    use_window = False
    if lt == "win" and loc > 0:
        use_window = True
    elif lt == "initial" and loc > 0:
        rw = params.rel_pos_score_weight[params.distance_rel]    # (L, L, local)
        mod_lll = jax.nn.sigmoid(jnp.transpose(rw, (2, 0, 1)) / 0.1)
    elif lt in ("conv", "rnn", "adapt"):
        # TODO(synk): Conv1d / GRU / user-MLP local-head paths not implemented.
        raise NotImplementedError(f"locker_type={lt} not implemented in Pallas")

    out, p = _attention_pallas(
        query, key, value, mask, mod_lll,
        use_window=use_window, global_num=g, window_size=params.window_size,
        block_q=block_q, block_k=block_k, compute_dtype=compute_dtype,
        return_p_attn=return_p_attn)

    if lt in ("win", "initial") and g > 0:
        if p is None:
            return out, (None, None)
        return out, (p[:, :g], p[:, g:])
    return out, p


# ------------------------------ reference ----------------------------------- #
def _build_head_mask_mod(params, mask, H, L):
    """Per-head (B,H,L,L) mask and (H,L,L) multiplicative reweight (reference)."""
    g = params.global_num
    B = mask.shape[0]
    mask_bhll = jnp.broadcast_to(mask, (B, H, L, L)).astype(jnp.int32)
    mod_hll = jnp.ones((H, L, L), jnp.float32)
    if params.locker_type == "win" and params.local_num > 0:
        wm = (params.distance_abs <= params.window_size).astype(jnp.int32)
        mask_bhll = jnp.concatenate(
            [mask_bhll[:, :g], mask_bhll[:, g:] * wm[None, None]], axis=1)
    elif params.locker_type == "initial" and params.local_num > 0:
        rw = jnp.transpose(params.rel_pos_score_weight[params.distance_rel], (2, 0, 1))
        mod_hll = jnp.concatenate(
            [jnp.ones((g, L, L), jnp.float32), jax.nn.sigmoid(rw / 0.1)], axis=0)
    return mask_bhll, mod_hll


def _reference(query, key, value, mask_bhll, mod_hll):
    dk = query.shape[-1]
    s = jnp.einsum("bhqd,bhkd->bhqk", query, key) / math.sqrt(dk)
    s = s * mod_hll[None]
    s = jnp.where(mask_bhll == 0, -MAX_VAL, s)
    p = jax.nn.softmax(s, axis=-1)
    return jnp.einsum("bhqk,bhkd->bhqd", p, value), p


# --------------------------------- demo ------------------------------------- #
if __name__ == "__main__":
    ok = True
    base_key = jax.random.PRNGKey(0)

    def make_inputs(key0, B, H, L, Dk):
        kq, kk, kv = jax.random.split(key0, 3)
        q = jax.random.normal(kq, (B, H, L, Dk), jnp.float32)
        k = jax.random.normal(kk, (B, H, L, Dk), jnp.float32)
        v = jax.random.normal(kv, (B, H, L, Dk), jnp.float32)
        m = jnp.broadcast_to(jnp.tril(jnp.ones((L, L), jnp.int32)), (B, 1, L, L))
        return q, k, v, m

    def close(a, b, atol, rtol):
        return bool(jnp.allclose(a, b, atol=atol, rtol=rtol))

    # -- case 1: tiny shapes; verify output AND probability matrix -----------
    B, H, L, Dk = 2, 4, 8, 8
    q, k, v, m = make_inputs(jax.random.fold_in(base_key, 1), B, H, L, Dk)
    for locker_type in ("vanilla", "win", "initial"):
        params = AttentionParams(n=L, d=H * Dk, d_k=Dk, num_attention_heads=H,
                                 local_num=2, locker_type=locker_type,
                                 window_size=2, sigma=1.0, alpha=1.0)
        out, p = attention_forward(params, q, k, v, m, return_p_attn=True)
        out = jax.block_until_ready(out)
        mask_bhll, mod_hll = _build_head_mask_mod(params, m, H, L)
        ref_out, ref_p = _reference(q, k, v, mask_bhll, mod_hll)
        p_full = jnp.concatenate(p, axis=1) if isinstance(p, tuple) else p
        ok = ok and close(out, ref_out, 1e-4, 1e-4)
        ok = ok and close(p_full, ref_p, 1e-4, 1e-4)

    # -- case 2: L not a multiple of the tile -> multiple KV tiles + padding --
    B, H, L, Dk = 1, 4, 200, 16
    q, k, v, m = make_inputs(jax.random.fold_in(base_key, 2), B, H, L, Dk)
    for locker_type in ("win", "initial"):
        params = AttentionParams(n=L, d=H * Dk, d_k=Dk, num_attention_heads=H,
                                 local_num=2, locker_type=locker_type,
                                 window_size=2, sigma=1.0, alpha=1.0)
        out, _ = attention_forward(params, q, k, v, m, return_p_attn=False)
        out = jax.block_until_ready(out)
        mask_bhll, mod_hll = _build_head_mask_mod(params, m, H, L)
        ref_out, _ = _reference(q, k, v, mask_bhll, mod_hll)
        ok = ok and close(out, ref_out, 1e-4, 1e-4)

    # -- bf16 MXU operands (v6e/v7x fast path); softmax math stays in f32 ----
    params = AttentionParams(n=L, d=H * Dk, d_k=Dk, num_attention_heads=H,
                             local_num=2, locker_type="vanilla",
                             window_size=2, sigma=1.0, alpha=1.0)
    out_bf16, _ = attention_forward(params, q, k, v, m, return_p_attn=False,
                                    compute_dtype=jnp.bfloat16)
    out_bf16 = jax.block_until_ready(out_bf16)
    mask_bhll, mod_hll = _build_head_mask_mod(params, m, H, L)
    ref_out, _ = _reference(q, k, v, mask_bhll, mod_hll)
    ok = ok and close(out_bf16, ref_out, 5e-2, 5e-2)

    print("KERNEL_OK" if ok else "KERNEL_MISMATCH")
</pallas_src>

<mosaic_0001>
module attributes {stable_mosaic.version = 11 : i64} {
  func.func @_flash_kernel(%arg0: i32, %arg1: i32, %arg2: i32, %arg3: i32, %arg4: memref<1x1x128x128xf32, #tpu.memory_space<vmem>>, %arg5: memref<1x1x128x128xf32, #tpu.memory_space<vmem>>, %arg6: memref<1x1x128x128xf32, #tpu.memory_space<vmem>>, %arg7: memref<1x1x128x128xi8, #tpu.memory_space<vmem>>, %arg8: memref<1x1x128x128xf32, #tpu.memory_space<vmem>>, %arg9: memref<1x1x128x1xf32, #tpu.memory_space<vmem>>, %arg10: memref<128x1xf32, #tpu.memory_space<vmem>>, %arg11: memref<128x1xf32, #tpu.memory_space<vmem>>, %arg12: memref<128x128xf32, #tpu.memory_space<vmem>>) attributes {dimension_semantics = [#tpu.dimension_semantics<parallel>, #tpu.dimension_semantics<parallel>, #tpu.dimension_semantics<parallel>, #tpu.dimension_semantics<arbitrary>], iteration_bounds = array<i64: 2, 4, 1, 1>, scalar_prefetch = 0 : i64, scratch_operands = 3 : i64, tpu.core_type = #tpu.core_type<tc>, window_params = [{transform_indices = @transform_0, window_bounds = array<i64: 1, 1, 128, 128>}, {transform_indices = @transform_1, window_bounds = array<i64: 1, 1, 128, 128>}, {transform_indices = @transform_2, window_bounds = array<i64: 1, 1, 128, 128>}, {transform_indices = @transform_3, window_bounds = array<i64: 1, 1, 128, 128>}, {transform_indices = @transform_4, window_bounds = array<i64: 1, 1, 128, 128>}, {transform_indices = @transform_5, window_bounds = array<i64: 1, 1, 128, 1>}]} {
    %c0_i32 = arith.constant 0 : i32
    %0 = arith.cmpi eq, %arg3, %c0_i32 : i32
    %1 = arith.extui %0 : i1 to i32
    %c0_i32_0 = arith.constant 0 : i32
    %2 = arith.cmpi ne, %1, %c0_i32_0 : i32
    scf.if %2 {
      %cst_37 = arith.constant 0xFF800000 : f32
      %52 = vector.broadcast %cst_37 : f32 to vector<128x1xf32>
      %c0_38 = arith.constant 0 : index
      %c0_39 = arith.constant 0 : index
      %53 = vector.load %arg10[%c0_38, %c0_39] : memref<128x1xf32, #tpu.memory_space<vmem>>, vector<128x1xf32>
      tpu.vector_store %arg10[%c0_38, %c0_39], %52 {strides = array<i32>} : memref<128x1xf32, #tpu.memory_space<vmem>>, vector<128x1xf32>,
      %cst_40 = arith.constant 0.000000e+00 : f32
      %54 = vector.broadcast %cst_40 : f32 to vector<128x1xf32>
      %c0_41 = arith.constant 0 : index
      %c0_42 = arith.constant 0 : index
      %55 = vector.load %arg11[%c0_41, %c0_42] : memref<128x1xf32, #tpu.memory_space<vmem>>, vector<128x1xf32>
      tpu.vector_store %arg11[%c0_41, %c0_42], %54 {strides = array<i32>} : memref<128x1xf32, #tpu.memory_space<vmem>>, vector<128x1xf32>,
      %cst_43 = arith.constant 0.000000e+00 : f32
      %56 = vector.broadcast %cst_43 : f32 to vector<128x128xf32>
      %c0_44 = arith.constant 0 : index
      %c0_45 = arith.constant 0 : index
      %57 = vector.load %arg12[%c0_44, %c0_45] : memref<128x128xf32, #tpu.memory_space<vmem>>, vector<128x128xf32>
      tpu.vector_store %arg12[%c0_44, %c0_45], %56 {strides = array<i32>} : memref<128x128xf32, #tpu.memory_space<vmem>>, vector<128x128xf32>,
    } else {
    }
    %c0 = arith.constant 0 : index
    %c0_1 = arith.constant 0 : index
    %c0_2 = arith.constant 0 : index
    %c0_3 = arith.constant 0 : index
    %3 = vector.load %arg4[%c0, %c0_1, %c0_2, %c0_3] : memref<1x1x128x128xf32, #tpu.memory_space<vmem>>, vector<1x1x128x128xf32>
    %4 = vector.shape_cast %3 : vector<1x1x128x128xf32> to vector<128x128xf32>
    %c0_4 = arith.constant 0 : index
    %c0_5 = arith.constant 0 : index
    %c0_6 = arith.constant 0 : index
    %c0_7 = arith.constant 0 : index
    %5 = vector.load %arg5[%c0_4, %c0_5, %c0_6, %c0_7] : memref<1x1x128x128xf32, #tpu.memory_space<vmem>>, vector<1x1x128x128xf32>
    %6 = vector.shape_cast %5 : vector<1x1x128x128xf32> to vector<128x128xf32>
    %cst = arith.constant dense<0.000000e+00> : vector<128x128xf32>
    %7 = tpu.matmul %4, %6, %cst {dimension_numbers = #tpu.dot_dimension_numbers<[1], [1], [0], [0], [0, 0, 1, 0], [], []>} : vector<128x128xf32>, vector<128x128xf32>, vector<128x128xf32> -> vector<128x128xf32>
    %cst_8 = arith.constant 0.353553385 : f32
    %8 = vector.broadcast %cst_8 : f32 to vector<128x128xf32>
    %9 = arith.mulf %7, %8 : vector<128x128xf32>
    %c128_i32 = arith.constant 128 : i32
    %10 = arith.muli %arg3, %c128_i32 : i32
    %11 = tpu.iota {dimensions = array<i32: 1>} : vector<128x128xi32>
    %12 = vector.broadcast %10 : i32 to vector<128x128xi32>
    %13 = arith.addi %12, %11 : vector<128x128xi32>
    %c0_9 = arith.constant 0 : index
    %c0_10 = arith.constant 0 : index
    %c0_11 = arith.constant 0 : index
    %c0_12 = arith.constant 0 : index
    %14 = vector.load %arg7[%c0_9, %c0_10, %c0_11, %c0_12] : memref<1x1x128x128xi8, #tpu.memory_space<vmem>>, vector<1x1x128x128xi8>
    %15 = vector.shape_cast %14 : vector<1x1x128x128xi8> to vector<128x128xi8>
    %16 = arith.extsi %15 : vector<128x128xi8> to vector<128x128xi32>
    %c0_i32_13 = arith.constant 0 : i32
    %17 = vector.broadcast %c0_i32_13 : i32 to vector<128x128xi32>
    %18 = arith.cmpi ne, %16, %17 : vector<128x128xi32>
    %cst_14 = arith.constant -9.99999995E+11 : f32
    %19 = vector.broadcast %cst_14 : f32 to vector<128x128xf32>
    %20 = arith.select %18, %9, %19 : vector<128x128xi1>, vector<128x128xf32>
    %c0_15 = arith.constant 0 : index
    %c0_16 = arith.constant 0 : index
    %21 = vector.load %arg10[%c0_15, %c0_16] : memref<128x1xf32, #tpu.memory_space<vmem>>, vector<128x1xf32>
    %cst_17 = arith.constant dense<0xFF800000> : vector<128xf32>
    %22 = vector.multi_reduction <maximumf>, %20, %cst_17 [1] : vector<128x128xf32> to vector<128xf32>
    %23 = vector.shape_cast %22 : vector<128xf32> to vector<128x1xf32>
    %24 = arith.maximumf %21, %23 : vector<128x1xf32>
    %25 = arith.subf %21, %24 : vector<128x1xf32>
    %26 = math.exp %25 : vector<128x1xf32>
    %27 = vector.broadcast %24 : vector<128x1xf32> to vector<128x128xf32>
    %28 = arith.subf %20, %27 : vector<128x128xf32>
    %29 = math.exp %28 : vector<128x128xf32>
    %c8_i32 = arith.constant 8 : i32
    %30 = vector.broadcast %c8_i32 : i32 to vector<128x128xi32>
    %31 = arith.cmpi slt, %13, %30 : vector<128x128xi32>
    %cst_18 = arith.constant 0.000000e+00 : f32
    %32 = vector.broadcast %cst_18 : f32 to vector<128x128xf32>
    %33 = arith.select %31, %29, %32 : vector<128x128xi1>, vector<128x128xf32>
    %c0_19 = arith.constant 0 : index
    %c0_20 = arith.constant 0 : index
    %c0_21 = arith.constant 0 : index
    %c0_22 = arith.constant 0 : index
    %34 = vector.load %arg6[%c0_19, %c0_20, %c0_21, %c0_22] : memref<1x1x128x128xf32, #tpu.memory_space<vmem>>, vector<1x1x128x128xf32>
    %35 = vector.shape_cast %34 : vector<1x1x128x128xf32> to vector<128x128xf32>
    %c0_23 = arith.constant 0 : index
    %c0_24 = arith.constant 0 : index
    %36 = vector.load %arg11[%c0_23, %c0_24] : memref<128x1xf32, #tpu.memory_space<vmem>>, vector<128x1xf32>
    %37 = arith.mulf %26, %36 : vector<128x1xf32>
    %cst_25 = arith.constant dense<0.000000e+00> : vector<128xf32>
    %38 = vector.multi_reduction <add>, %33, %cst_25 [1] : vector<128x128xf32> to vector<128xf32>
    %39 = vector.shape_cast %38 : vector<128xf32> to vector<128x1xf32>
    %40 = arith.addf %37, %39 : vector<128x1xf32>
    %c0_26 = arith.constant 0 : index
    %c0_27 = arith.constant 0 : index
    %41 = vector.load %arg11[%c0_26, %c0_27] : memref<128x1xf32, #tpu.memory_space<vmem>>, vector<128x1xf32>
    tpu.vector_store %arg11[%c0_26, %c0_27], %40 {strides = array<i32>} : memref<128x1xf32, #tpu.memory_space<vmem>>, vector<128x1xf32>,
    %c0_28 = arith.constant 0 : index
    %c0_29 = arith.constant 0 : index
    %42 = vector.load %arg12[%c0_28, %c0_29] : memref<128x128xf32, #tpu.memory_space<vmem>>, vector<128x128xf32>
    %43 = vector.broadcast %26 : vector<128x1xf32> to vector<128x128xf32>
    %44 = arith.mulf %43, %42 : vector<128x128xf32>
    %cst_30 = arith.constant dense<0.000000e+00> : vector<128x128xf32>
    %45 = tpu.matmul %33, %35, %cst_30 {dimension_numbers = #tpu.dot_dimension_numbers<[1], [0], [0], [1], [0, 0, 1, 1], [], []>} : vector<128x128xf32>, vector<128x128xf32>, vector<128x128xf32> -> vector<128x128xf32>
    %46 = arith.addf %44, %45 : vector<128x128xf32>
    %c0_31 = arith.constant 0 : index
    %c0_32 = arith.constant 0 : index
    %47 = vector.load %arg12[%c0_31, %c0_32] : memref<128x128xf32, #tpu.memory_space<vmem>>, vector<128x128xf32>
    tpu.vector_store %arg12[%c0_31, %c0_32], %46 {strides = array<i32>} : memref<128x128xf32, #tpu.memory_space<vmem>>, vector<128x128xf32>,
    %c0_33 = arith.constant 0 : index
    %c0_34 = arith.constant 0 : index
    %48 = vector.load %arg10[%c0_33, %c0_34] : memref<128x1xf32, #tpu.memory_space<vmem>>, vector<128x1xf32>
    tpu.vector_store %arg10[%c0_33, %c0_34], %24 {strides = array<i32>} : memref<128x1xf32, #tpu.memory_space<vmem>>, vector<128x1xf32>,
    %c0_i32_35 = arith.constant 0 : i32
    %49 = arith.cmpi eq, %arg3, %c0_i32_35 : i32
    %50 = arith.extui %49 : i1 to i32
    %c0_i32_36 = arith.constant 0 : i32
    %51 = arith.cmpi ne, %50, %c0_i32_36 : i32
    scf.if %51 {
      %c0_37 = arith.constant 0 : index
      %c0_38 = arith.constant 0 : index
      %52 = vector.load %arg12[%c0_37, %c0_38] : memref<128x128xf32, #tpu.memory_space<vmem>>, vector<128x128xf32>
      %c0_39 = arith.constant 0 : index
      %c0_40 = arith.constant 0 : index
      %53 = vector.load %arg11[%c0_39, %c0_40] : memref<128x1xf32, #tpu.memory_space<vmem>>, vector<128x1xf32>
      %54 = vector.broadcast %53 : vector<128x1xf32> to vector<128x128xf32>
      %55 = arith.divf %52, %54 : vector<128x128xf32>
      %c0_41 = arith.constant 0 : index
      %c0_42 = arith.constant 0 : index
      %c0_43 = arith.constant 0 : index
      %c0_44 = arith.constant 0 : index
      %56 = vector.load %arg8[%c0_41, %c0_42, %c0_43, %c0_44] : memref<1x1x128x128xf32, #tpu.memory_space<vmem>>, vector<1x1x128x128xf32>
      %57 = vector.shape_cast %56 : vector<1x1x128x128xf32> to vector<128x128xf32>
      %58 = vector.shape_cast %55 : vector<128x128xf32> to vector<1x1x128x128xf32>
      tpu.vector_store %arg8[%c0_41, %c0_42, %c0_43, %c0_44], %58 {strides = array<i32>} : memref<1x1x128x128xf32, #tpu.memory_space<vmem>>, vector<1x1x128x128xf32>,
      %c0_45 = arith.constant 0 : index
      %c0_46 = arith.constant 0 : index
      %59 = vector.load %arg10[%c0_45, %c0_46] : memref<128x1xf32, #tpu.memory_space<vmem>>, vector<128x1xf32>
      %c0_47 = arith.constant 0 : index
      %c0_48 = arith.constant 0 : index
      %60 = vector.load %arg11[%c0_47, %c0_48] : memref<128x1xf32, #tpu.memory_space<vmem>>, vector<128x1xf32>
      %61 = math.log %60 : vector<128x1xf32>
      %62 = arith.addf %59, %61 : vector<128x1xf32>
      %c0_49 = arith.constant 0 : index
      %c0_50 = arith.constant 0 : index
      %c0_51 = arith.constant 0 : index
      %c0_52 = arith.constant 0 : index
      %63 = vector.load %arg9[%c0_49, %c0_50, %c0_51, %c0_52] : memref<1x1x128x1xf32, #tpu.memory_space<vmem>>, vector<1x1x128x1xf32>
      %64 = vector.shape_cast %63 : vector<1x1x128x1xf32> to vector<128x1xf32>
      %65 = vector.shape_cast %62 : vector<128x1xf32> to vector<1x1x128x1xf32>
      tpu.vector_store %arg9[%c0_49, %c0_50, %c0_51, %c0_52], %65 {strides = array<i32>} : memref<1x1x128x1xf32, #tpu.memory_space<vmem>>, vector<1x1x128x1xf32>,
    } else {
    }
    return
  }
  func.func @transform_0(%arg0: i32, %arg1: i32, %arg2: i32, %arg3: i32) -> (i32, i32, i32, i32) {
    %c0_i32 = arith.constant 0 : i32
    %c0_i32_0 = arith.constant 0 : i32
    return %arg0, %arg1, %arg2, %c0_i32 : i32, i32, i32, i32
  }
  func.func @transform_1(%arg0: i32, %arg1: i32, %arg2: i32, %arg3: i32) -> (i32, i32, i32, i32) {
    %c0_i32 = arith.constant 0 : i32
    %c0_i32_0 = arith.constant 0 : i32
    return %arg0, %arg1, %arg3, %c0_i32 : i32, i32, i32, i32
  }
  func.func @transform_2(%arg0: i32, %arg1: i32, %arg2: i32, %arg3: i32) -> (i32, i32, i32, i32) {
    %c0_i32 = arith.constant 0 : i32
    %c0_i32_0 = arith.constant 0 : i32
    return %arg0, %arg1, %arg3, %c0_i32 : i32, i32, i32, i32
  }
  func.func @transform_3(%arg0: i32, %arg1: i32, %arg2: i32, %arg3: i32) -> (i32, i32, i32, i32) {
    %c0_i32 = arith.constant 0 : i32
    %c0_i32_0 = arith.constant 0 : i32
    return %arg0, %c0_i32, %arg2, %arg3 : i32, i32, i32, i32
  }
  func.func @transform_4(%arg0: i32, %arg1: i32, %arg2: i32, %arg3: i32) -> (i32, i32, i32, i32) {
    %c0_i32 = arith.constant 0 : i32
    %c0_i32_0 = arith.constant 0 : i32
    return %arg0, %arg1, %arg2, %c0_i32 : i32, i32, i32, i32
  }
  func.func @transform_5(%arg0: i32, %arg1: i32, %arg2: i32, %arg3: i32) -> (i32, i32, i32, i32) {
    %c0_i32 = arith.constant 0 : i32
    %c0_i32_0 = arith.constant 0 : i32
    return %arg0, %arg1, %arg2, %c0_i32 : i32, i32, i32, i32
  }
}

</mosaic_0001>

<llo_original>
// kernel: tpu_custom_call.1
$region0: #{tpu_custom_call.1}
  #allocation0 [shape = 'u32[]', space=smem, size = 0x4, offset = 0x4, fixed_abs, tag = 'smem constant byte address 0x4 - core index']
  #allocation1 [shape = 'u32[144,128]{1,0:T(1,128)}', space=vmem, size = 0x12000, scoped, tag = 'internal scratch']
  #allocation2 [shape = 'f32[128,1]{1,0:T(8,128)}', space=vmem, size = 0x10000, scoped, tag = 'scratch operand']
  #allocation3 [shape = 'f32[128,1]{1,0:T(8,128)}', space=vmem, size = 0x10000, scoped, tag = 'scratch operand']
  #allocation4 [shape = 'f32[128,128]{1,0:T(8,128)}', space=vmem, size = 0x10000, scoped, tag = 'scratch operand']
  %s0 = inlined_call_operand.hbm [shape: f32[2,4,128,128], index: 0, kind: input, shape index: {}]
  %s1 = inlined_call_operand.hbm [shape: f32[2,4,128,128], index: 1, kind: input, shape index: {}]
  %s2 = inlined_call_operand.hbm [shape: f32[2,4,128,128], index: 2, kind: input, shape index: {}]
  %s3 = inlined_call_operand.hbm [shape: s8[2,1,128,128], index: 3, kind: input, shape index: {}]
  %s4 = inlined_call_operand.hbm [shape: f32[2,4,128,128], index: 4, kind: output, shape index: {0}]
  %s5 = inlined_call_operand.vmem [shape: f32[2,4,128,1], index: 5, kind: output, shape index: {1}]
  %6 = xla_tuple %s4, %s5
  %s7 = sld [smem:[#allocation0]]
  $region81: #{tpu_custom_call.1} parent=0
    _
  %s9 = ssub.s32 1, %s7
  %s10 = scalar_select 0, %s9, %s7
  $region1: #{tpu_custom_call.1} parent=0
    #allocation5 [shape = 'u8[131072]{0}', space=vmem, size = 0x20000, scoped, tag = 'input window, operand 0']
    #allocation6 [shape = 's32[2]{0}', space=sflag, size = 0x8, scoped, tag = 'scoped memory for tpu_custom_call.1']
    #allocation7 [shape = 's32[2]{0}', space=sflag, size = 0x8, scoped, tag = 'scoped memory for tpu_custom_call.1']
    #allocation8 [shape = 'u8[131072]{0}', space=vmem, size = 0x20000, scoped, tag = 'input window, operand 1']
    #allocation9 [shape = 's32[2]{0}', space=sflag, size = 0x8, scoped, tag = 'scoped memory for tpu_custom_call.1']
    #allocation10 [shape = 'u8[131072]{0}', space=vmem, size = 0x20000, scoped, tag = 'input window, operand 2']
    #allocation11 [shape = 'u8[32768]{0}', space=vmem, size = 0x8000, scoped, tag = 'input window, operand 3']
    #allocation12 [shape = 's32[2]{0}', space=sflag, size = 0x8, scoped, tag = 'scoped memory for tpu_custom_call.1']
    #allocation13 [shape = 'u8[131072]{0}', space=vmem, size = 0x20000, scoped, tag = 'output window, operand 0']
    %11 = vsyncpa [#allocation6], 0
    %s12 = scalar_lea.sflag [#allocation6], 1
    %13 = vsyncpa %s12, 0
    %14 = vsyncpa [#allocation9], 0
    %s15 = scalar_lea.sflag [#allocation9], 1
    %16 = vsyncpa %s15, 0
    %17 = vsyncpa [#allocation12], 0
    %s18 = scalar_lea.sflag [#allocation12], 1
    %19 = vsyncpa %s18, 0
    %20 = vsyncpa [#allocation7], 0
    %s21 = scalar_lea.sflag [#allocation7], 1
    %22 = vsyncpa %s21, 0
    loop: start=0, step=1, limit=10
    $region2: #{tpu_custom_call.1} parent=1 // loop_pre_header
      _
    $region3: #{tpu_custom_call.1} parent=1 // loop_header
      %s24 = sphi 0, %s28
      %p25 = scmp.ge.s32.totalorder %s24, 10
      %s31 = sphi 0, %s57
      %s32 = sphi 0, %s53
      %s33 = sphi 0, %s49
      %s34 = sphi 0, %s45
      %s35 = sphi 0, %s31
      %s36 = sphi 0, %s32
      %s37 = sphi 0, %s33
      %s38 = sphi 0, %s34
      %s39 = sphi 0, %s35
      %s40 = sphi 0, %s36
      %s41 = sphi 0, %s37
      %s42 = sphi 0, %s38
      %s64 = sphi 0, %s66
      %s67 = sphi 0, %s64
      %s68 = sphi 0, %s67
      %s84 = sphi 0, %s68
      %s94 = sphi 0, %s96
      %s97 = sphi 0, %s94
      %s98 = sphi 0, %s97
      %s114 = sphi 0, %s98
      %s124 = sphi 0, %s126
      %s127 = sphi 0, %s124
      %s128 = sphi 0, %s127
      %s144 = sphi 0, %s128
      %s154 = sphi 0, %s156
      %s157 = sphi 0, %s154
      %s158 = sphi 0, %s157
      %s174 = sphi 0, %s158
      %s184 = sphi 0, %s186
      %s187 = sphi 0, %s184
      %s188 = sphi 0, %s187
      %s204 = sphi 0, %s188
      %s214 = sphi 0, %s216
      %s217 = sphi 0, %s214
      %s218 = sphi 0, %s217
      %s234 = sphi 0, %s218
    $region4: #{tpu_custom_call.1} parent=1 // loop_header_branch
      %27 = sbr.rel (%p25) target = $region8
    $region5: #{tpu_custom_call.1} parent=1 // loop_body
      %s29 = ssub.s32 %s24, 1
      %s30 = ssub.s32 %s24, 2
      %s43 = sadd.s32 1, %s34
      %p44 = scmp.ge.s32.totalorder %s43, 1
      %s45 = scalar_select %p44, 0, %s43
      %s46 = sadd.s32 1, %s33
      %s47 = scalar_select %p44, %s46, %s33
      %p48 = scmp.ge.s32.totalorder %s47, 1
      %s49 = scalar_select %p48, 0, %s47
      %s50 = sadd.s32 1, %s32
      %s51 = scalar_select %p48, %s50, %s32
      %p52 = scmp.ge.s32.totalorder %s51, 4
      %s53 = scalar_select %p52, 0, %s51
      %s54 = sadd.s32 1, %s31
      %s55 = scalar_select %p52, %s54, %s31
      %p56 = scmp.ge.s32.totalorder %s55, 2
      %s57 = scalar_select %p56, 0, %s55
      %s58 = ssub.s32 %s31, %s57
      %s59 = ssub.s32 %s32, %s53
      %s60 = sor.u32 %s58, %s59
      %s61 = ssub.s32 %s33, %s49
      %s62 = sor.u32 %s60, %s61
      %p63 = scmp.eq.s32.totalorder %s62, 0
      %s65 = sadd.s32 %s64, 1
      %s66 = scalar_select %p63, %s64, %s65
      %p69 = pneg %p63
      %p70 = scmp.eq.s32.totalorder %s24, 7
      %p71 = por %p69, %p70
      %p72 = scmp.ne.s32.totalorder %s64, %s67
      %p73 = scmp.eq.s32.totalorder %s24, 0
      %p74 = por %p72, %p73
      %p75 = scmp.ne.s32.totalorder %s64, %s67
      %p76 = scmp.eq.s32.totalorder %s29, 7
      %p77 = por %p75, %p76
      %p78 = scmp.ne.s32.totalorder %s67, %s68
      %p79 = scmp.eq.s32.totalorder %s29, 0
      %p80 = por %p78, %p79
      %p81 = scmp.ne.s32.totalorder %s67, %s68
      %p82 = scmp.eq.s32.totalorder %s30, 7
      %p83 = por %p81, %p82
      %p85 = scmp.ne.s32.totalorder %s68, %s84
      %p86 = scmp.eq.s32.totalorder %s30, 0
      %p87 = por %p85, %p86
      %s88 = ssub.s32 %s31, %s57
      %s89 = ssub.s32 %s32, %s53
      %s90 = sor.u32 %s88, %s89
      %s91 = ssub.s32 %s34, %s45
      %s92 = sor.u32 %s90, %s91
      %p93 = scmp.eq.s32.totalorder %s92, 0
      %s95 = sadd.s32 %s94, 1
      %s96 = scalar_select %p93, %s94, %s95
      %p99 = pneg %p93
      %p100 = scmp.eq.s32.totalorder %s24, 7
      %p101 = por %p99, %p100
      %p102 = scmp.ne.s32.totalorder %s94, %s97
      %p103 = scmp.eq.s32.totalorder %s24, 0
      %p104 = por %p102, %p103
      %p105 = scmp.ne.s32.totalorder %s94, %s97
      %p106 = scmp.eq.s32.totalorder %s29, 7
      %p107 = por %p105, %p106
      %p108 = scmp.ne.s32.totalorder %s97, %s98
      %p109 = scmp.eq.s32.totalorder %s29, 0
      %p110 = por %p108, %p109
      %p111 = scmp.ne.s32.totalorder %s97, %s98
      %p112 = scmp.eq.s32.totalorder %s30, 7
      %p113 = por %p111, %p112
      %p115 = scmp.ne.s32.totalorder %s98, %s114
      %p116 = scmp.eq.s32.totalorder %s30, 0
      %p117 = por %p115, %p116
      %s118 = ssub.s32 %s31, %s57
      %s119 = ssub.s32 %s32, %s53
      %s120 = sor.u32 %s118, %s119
      %s121 = ssub.s32 %s34, %s45
      %s122 = sor.u32 %s120, %s121
      %p123 = scmp.eq.s32.totalorder %s122, 0
      %s125 = sadd.s32 %s124, 1
      %s126 = scalar_select %p123, %s124, %s125
      %p129 = pneg %p123
      %p130 = scmp.eq.s32.totalorder %s24, 7
      %p131 = por %p129, %p130
      %p132 = scmp.ne.s32.totalorder %s124, %s127
      %p133 = scmp.eq.s32.totalorder %s24, 0
      %p134 = por %p132, %p133
      %p135 = scmp.ne.s32.totalorder %s124, %s127
      %p136 = scmp.eq.s32.totalorder %s29, 7
      %p137 = por %p135, %p136
      %p138 = scmp.ne.s32.totalorder %s127, %s128
      %p139 = scmp.eq.s32.totalorder %s29, 0
      %p140 = por %p138, %p139
      %p141 = scmp.ne.s32.totalorder %s127, %s128
      %p142 = scmp.eq.s32.totalorder %s30, 7
      %p143 = por %p141, %p142
      %p145 = scmp.ne.s32.totalorder %s128, %s144
      %p146 = scmp.eq.s32.totalorder %s30, 0
      %p147 = por %p145, %p146
      %s148 = ssub.s32 %s31, %s57
      %s149 = ssub.s32 %s33, %s49
      %s150 = sor.u32 %s148, %s149
      %s151 = ssub.s32 %s34, %s45
      %s152 = sor.u32 %s150, %s151
      %p153 = scmp.eq.s32.totalorder %s152, 0
      %s155 = sadd.s32 %s154, 1
      %s156 = scalar_select %p153, %s154, %s155
      %p159 = pneg %p153
      %p160 = scmp.eq.s32.totalorder %s24, 7
      %p161 = por %p159, %p160
      %p162 = scmp.ne.s32.totalorder %s154, %s157
      %p163 = scmp.eq.s32.totalorder %s24, 0
      %p164 = por %p162, %p163
      %p165 = scmp.ne.s32.totalorder %s154, %s157
      %p166 = scmp.eq.s32.totalorder %s29, 7
      %p167 = por %p165, %p166
      %p168 = scmp.ne.s32.totalorder %s157, %s158
      %p169 = scmp.eq.s32.totalorder %s29, 0
      %p170 = por %p168, %p169
      %p171 = scmp.ne.s32.totalorder %s157, %s158
      %p172 = scmp.eq.s32.totalorder %s30, 7
      %p173 = por %p171, %p172
      %p175 = scmp.ne.s32.totalorder %s158, %s174
      %p176 = scmp.eq.s32.totalorder %s30, 0
      %p177 = por %p175, %p176
      %s178 = ssub.s32 %s31, %s57
      %s179 = ssub.s32 %s32, %s53
      %s180 = sor.u32 %s178, %s179
      %s181 = ssub.s32 %s33, %s49
      %s182 = sor.u32 %s180, %s181
      %p183 = scmp.eq.s32.totalorder %s182, 0
      %s185 = sadd.s32 %s184, 1
      %s186 = scalar_select %p183, %s184, %s185
      %p189 = pneg %p183
      %p190 = scmp.eq.s32.totalorder %s24, 7
      %p191 = por %p189, %p190
      %p192 = scmp.ne.s32.totalorder %s184, %s187
      %p193 = scmp.eq.s32.totalorder %s24, 0
      %p194 = por %p192, %p193
      %p195 = scmp.ne.s32.totalorder %s184, %s187
      %p196 = scmp.eq.s32.totalorder %s29, 7
      %p197 = por %p195, %p196
      %p198 = scmp.ne.s32.totalorder %s187, %s188
      %p199 = scmp.eq.s32.totalorder %s29, 0
      %p200 = por %p198, %p199
      %p201 = scmp.ne.s32.totalorder %s187, %s188
      %p202 = scmp.eq.s32.totalorder %s30, 7
      %p203 = por %p201, %p202
      %p205 = scmp.ne.s32.totalorder %s188, %s204
      %p206 = scmp.eq.s32.totalorder %s30, 0
      %p207 = por %p205, %p206
      %s208 = ssub.s32 %s31, %s57
      %s209 = ssub.s32 %s32, %s53
      %s210 = sor.u32 %s208, %s209
      %s211 = ssub.s32 %s33, %s49
      %s212 = sor.u32 %s210, %s211
      %p213 = scmp.eq.s32.totalorder %s212, 0
      %s215 = sadd.s32 %s214, 1
      %s216 = scalar_select %p213, %s214, %s215
      %p219 = pneg %p213
      %p220 = scmp.eq.s32.totalorder %s24, 7
      %p221 = por %p219, %p220
      %p222 = scmp.ne.s32.totalorder %s214, %s217
      %p223 = scmp.eq.s32.totalorder %s24, 0
      %p224 = por %p222, %p223
      %p225 = scmp.ne.s32.totalorder %s214, %s217
      %p226 = scmp.eq.s32.totalorder %s29, 7
      %p227 = por %p225, %p226
      %p228 = scmp.ne.s32.totalorder %s217, %s218
      %p229 = scmp.eq.s32.totalorder %s29, 0
      %p230 = por %p228, %p229
      %p231 = scmp.ne.s32.totalorder %s217, %s218
      %p232 = scmp.eq.s32.totalorder %s30, 7
      %p233 = por %p231, %p232
      %p235 = scmp.ne.s32.totalorder %s218, %s234
      %p236 = scmp.eq.s32.totalorder %s30, 0
      %p237 = por %p235, %p236
      %p238 = scmp.le.s32.totalorder 1, %s24
      %p239 = scmp.lt.s32.totalorder %s24, 9
      %p240 = pnand %p238, %p239
      %p241 = pneg %p240
      // Predicated region
      $region9: #{tpu_custom_call.1} parent=5 // pred_check
        _
      $region10: #{tpu_custom_call.1} parent=5 // pred_check_branch
        %243 = sbr.rel (%p240) target = $region12
      $region11: #{tpu_custom_call.1} parent=5 // pred_region
        %s244 = ssub.s32 %s24, 1
      $region12: #{tpu_custom_call.1} parent=5 // pred_fallthru
        _
      %p245 = scmp.lt.s32.totalorder %s24, 8
      // Predicated region
      $region13: #{tpu_custom_call.1} parent=5 // pred_check
        %p246 = pneg %p245
      $region14: #{tpu_custom_call.1} parent=5 // pred_check_branch
        %248 = sbr.rel (%p246) target = $region16
      $region15: #{tpu_custom_call.1} parent=5 // pred_region
        // Predicated region
        $region17: #{tpu_custom_call.1} parent=15 // pred_check
          %p249 = pneg %p74
        $region18: #{tpu_custom_call.1} parent=15 // pred_check_branch
          %251 = sbr.rel (%p249) target = $region20
        $region19: #{tpu_custom_call.1} parent=15 // pred_region
          %s252 = sand.u32 %s64, 1
          %s253 = scalar_lea.sflag [#allocation6], %s252
          %s254 = sand.u32 %s64, 1
          %s255 = smul.addr %s254, 128
          %s256 = scalar_lea.vmem [#allocation5], %s255
          %s257 = smul.u32 16, %s33
          %s259 = ssub.s32 2048, 2048
          %260 = vsyncadd %s253, %s259
          %s261 = smul.addr %s32, 16
          %s262 = sadd.s32 %s257, %s261
          %s263 = smul.addr %s31, 64
          %s264 = sadd.s32 %s262, %s263
          %s265 = smul.addr %s264, 128
          %s266 = scalar_lea.hbm %s0, %s265
          %s267 = sshll.u32 %s256, 4
          %s268 = int_to_ptr.vmem [resolvable:$true] %s267
          %273 = dma.hbm_to_vmem [thread:$0]  %s266, 2048, %s268, %s253, 128, 128, 8
        $region20: #{tpu_custom_call.1} parent=15 // pred_fallthru
          _
        // Predicated region
        $region21: #{tpu_custom_call.1} parent=15 // pred_check
          %p274 = pneg %p104
        $region22: #{tpu_custom_call.1} parent=15 // pred_check_branch
          %276 = sbr.rel (%p274) target = $region24
        $region23: #{tpu_custom_call.1} parent=15 // pred_region
          %s277 = sand.u32 %s24, 1
          %s278 = scalar_lea.sflag [#allocation9], %s277
          %s279 = sand.u32 %s94, 1
          %s280 = smul.addr %s279, 128
          %s281 = scalar_lea.vmem [#allocation8], %s280
          %s282 = smul.u32 16, %s34
          %s284 = ssub.s32 2048, 2048
          %285 = vsyncadd %s278, %s284
          %s286 = smul.addr %s32, 16
          %s287 = sadd.s32 %s282, %s286
          %s288 = smul.addr %s31, 64
          %s289 = sadd.s32 %s287, %s288
          %s290 = smul.addr %s289, 128
          %s291 = scalar_lea.hbm %s1, %s290
          %s292 = sshll.u32 %s281, 4
          %s293 = int_to_ptr.vmem [resolvable:$true] %s292
          %298 = dma.hbm_to_vmem [thread:$0]  %s291, 2048, %s293, %s278, 128, 128, 8
        $region24: #{tpu_custom_call.1} parent=15 // pred_fallthru
          _
        // Predicated region
        $region25: #{tpu_custom_call.1} parent=15 // pred_check
          %p299 = pneg %p134
        $region26: #{tpu_custom_call.1} parent=15 // pred_check_branch
          %301 = sbr.rel (%p299) target = $region28
        $region27: #{tpu_custom_call.1} parent=15 // pred_region
          %s302 = sand.u32 %s24, 1
          %s303 = scalar_lea.sflag [#allocation9], %s302
          %s304 = sand.u32 %s124, 1
          %s305 = smul.addr %s304, 128
          %s306 = scalar_lea.vmem [#allocation10], %s305
          %s307 = smul.u32 16, %s34
          %s309 = ssub.s32 2048, 2048
          %310 = vsyncadd %s303, %s309
          %s311 = smul.addr %s32, 16
          %s312 = sadd.s32 %s307, %s311
          %s313 = smul.addr %s31, 64
          %s314 = sadd.s32 %s312, %s313
          %s315 = smul.addr %s314, 128
          %s316 = scalar_lea.hbm %s2, %s315
          %s317 = sshll.u32 %s306, 4
          %s318 = int_to_ptr.vmem [resolvable:$true] %s317
          %323 = dma.hbm_to_vmem [thread:$0]  %s316, 2048, %s318, %s303, 128, 128, 8
        $region28: #{tpu_custom_call.1} parent=15 // pred_fallthru
          _
        // Predicated region
        $region29: #{tpu_custom_call.1} parent=15 // pred_check
          %p324 = pneg %p164
        $region30: #{tpu_custom_call.1} parent=15 // pred_check_branch
          %326 = sbr.rel (%p324) target = $region32
        $region31: #{tpu_custom_call.1} parent=15 // pred_region
          %s327 = sand.u32 %s154, 1
          %s328 = scalar_lea.sflag [#allocation12], %s327
          %s329 = sand.u32 %s154, 1
          %s330 = smul.addr %s329, 32
          %s331 = scalar_lea.vmem [#allocation11], %s330
          %s332 = smul.u32 4, %s33
          %s334 = ssub.s32 512, 512
          %335 = vsyncadd %s328, %s334
          %s336 = sadd.s32 %s34, %s332
          %s337 = smul.addr %s31, 4
          %s338 = sadd.s32 %s336, %s337
          %s339 = smul.addr %s338, 128
          %s340 = scalar_lea.hbm %s3, %s339
          %s341 = sshll.u32 %s331, 4
          %s342 = int_to_ptr.vmem [resolvable:$true] %s341
          %347 = dma.hbm_to_vmem [thread:$0]  %s340, 512, %s342, %s328, 128, 128, 8
        $region32: #{tpu_custom_call.1} parent=15 // pred_fallthru
          _
      $region16: #{tpu_custom_call.1} parent=5 // pred_fallthru
        _
      %p348 = scmp.le.s32.totalorder 1, %s24
      %p349 = scmp.lt.s32.totalorder %s24, 9
      %p350 = pnand %p348, %p349
      %p351 = pneg %p350
      // Predicated region
      $region33: #{tpu_custom_call.1} parent=5 // pred_check
        _
      $region34: #{tpu_custom_call.1} parent=5 // pred_check_branch
        %353 = sbr.rel (%p350) target = $region36
      $region35: #{tpu_custom_call.1} parent=5 // pred_region
        %s354 = ssub.s32 %s24, 1
        %s355 = sand.u32 %s67, 1
        %s356 = scalar_lea.sflag [#allocation6], %s355
        %s357 = sand.u32 %s67, 1
        %s358 = smul.addr %s357, 128
        %s359 = scalar_lea.vmem [#allocation5], %s358
        // Predicated region
        $region37: #{tpu_custom_call.1} parent=35 // pred_check
          %p360 = pneg %p80
        $region38: #{tpu_custom_call.1} parent=35 // pred_check_branch
          %362 = sbr.rel (%p360) target = $region40
        $region39: #{tpu_custom_call.1} parent=35 // pred_region
          %363 = dma.done %s356, 2048
        $region40: #{tpu_custom_call.1} parent=35 // pred_fallthru
          _
        %s364 = sand.u32 %s29, 1
        %s365 = scalar_lea.sflag [#allocation9], %s364
        %s366 = sand.u32 %s97, 1
        %s367 = smul.addr %s366, 128
        %s368 = scalar_lea.vmem [#allocation8], %s367
        // Predicated region
        $region41: #{tpu_custom_call.1} parent=35 // pred_check
          %p369 = pneg %p110
        $region42: #{tpu_custom_call.1} parent=35 // pred_check_branch
          %371 = sbr.rel (%p369) target = $region44
        $region43: #{tpu_custom_call.1} parent=35 // pred_region
          %372 = dma.done %s365, 2048
        $region44: #{tpu_custom_call.1} parent=35 // pred_fallthru
          _
        %s373 = sand.u32 %s29, 1
        %s374 = scalar_lea.sflag [#allocation9], %s373
        %s375 = sand.u32 %s127, 1
        %s376 = smul.addr %s375, 128
        %s377 = scalar_lea.vmem [#allocation10], %s376
        // Predicated region
        $region45: #{tpu_custom_call.1} parent=35 // pred_check
          %p378 = pneg %p140
        $region46: #{tpu_custom_call.1} parent=35 // pred_check_branch
          %380 = sbr.rel (%p378) target = $region48
        $region47: #{tpu_custom_call.1} parent=35 // pred_region
          %381 = dma.done %s374, 2048
        $region48: #{tpu_custom_call.1} parent=35 // pred_fallthru
          _
        %s382 = sand.u32 %s157, 1
        %s383 = scalar_lea.sflag [#allocation12], %s382
        %s384 = sand.u32 %s157, 1
        %s385 = smul.addr %s384, 32
        %s386 = scalar_lea.vmem [#allocation11], %s385
        // Predicated region
        $region49: #{tpu_custom_call.1} parent=35 // pred_check
          %p387 = pneg %p170
        $region50: #{tpu_custom_call.1} parent=35 // pred_check_branch
          %389 = sbr.rel (%p387) target = $region52
        $region51: #{tpu_custom_call.1} parent=35 // pred_region
          %390 = dma.done %s383, 512
        $region52: #{tpu_custom_call.1} parent=35 // pred_fallthru
          _
        %s391 = sand.u32 %s67, 1
        %s392 = scalar_lea.sflag [#allocation6], %s391
        %s393 = sand.u32 %s67, 1
        %s394 = smul.addr %s393, 128
        %s395 = scalar_lea.vmem [#allocation5], %s394
        %p396 = pneg %p80
        %p397 = pneg %p77
        %s398 = sand.u32 %s29, 1
        %s399 = scalar_lea.sflag [#allocation9], %s398
        %s400 = sand.u32 %s97, 1
        %s401 = smul.addr %s400, 128
        %s402 = scalar_lea.vmem [#allocation8], %s401
        %p403 = pneg %p110
        %p404 = pneg %p107
        %s405 = sand.u32 %s29, 1
        %s406 = scalar_lea.sflag [#allocation9], %s405
        %s407 = sand.u32 %s127, 1
        %s408 = smul.addr %s407, 128
        %s409 = scalar_lea.vmem [#allocation10], %s408
        %p410 = pneg %p140
        %p411 = pneg %p137
        %s412 = sand.u32 %s157, 1
        %s413 = scalar_lea.sflag [#allocation12], %s412
        %s414 = sand.u32 %s157, 1
        %s415 = smul.addr %s414, 32
        %s416 = scalar_lea.vmem [#allocation11], %s415
        %p417 = pneg %p170
        %p418 = pneg %p167
        %p419 = pneg %p200
        %p420 = pneg %p197
        %s421 = sand.u32 %s187, 1
        %s422 = scalar_lea.sflag [#allocation7], %s421
        %s423 = sand.u32 %s187, 1
        %s424 = smul.addr %s423, 128
        %s425 = scalar_lea.vmem [#allocation13], %s424
        %p426 = pneg %p230
        %p427 = pneg %p227
        %s428 = smul.u32 16, %s37
        %p429 = scmp.lt.s32.totalorder %s35, 1
        %s430 = scalar_select %p429, %s35, 1
        %p431 = scmp.lt.s32.totalorder %s36, 3
        %s432 = scalar_select %p431, %s36, 3
        %p433 = scmp.lt.s32.totalorder %s428, 15
        %s434 = scalar_select %p433, %s428, 15
        %s435 = smul.addr %s432, 16
        %s436 = sadd.s32 %s434, %s435
        %s437 = smul.addr %s430, 64
        %s438 = sadd.s32 %s436, %s437
        %s439 = smul.addr %s438, 8
        %s440 = scalar_lea.vmem %s5, %s439
        %s441 = smul.u32 16, %s37
        %s442 = smul.u32 16, %s38
        %s443 = smul.u32 16, %s38
        %s444 = smul.u32 4, %s37
        %s445 = smul.u32 16, %s37
        %s446 = smul.u32 16, %s37
        %p447 = scmp.lt.s32.totalorder %s35, 1
        %s448 = scalar_select %p447, %s35, 1
        %p449 = scmp.lt.s32.totalorder %s36, 3
        %s450 = scalar_select %p449, %s36, 3
        %p451 = scmp.lt.s32.totalorder %s446, 15
        %s452 = scalar_select %p451, %s446, 15
        %s453 = smul.addr %s450, 16
        %s454 = sadd.s32 %s452, %s453
        %s455 = smul.addr %s448, 64
        %s456 = sadd.s32 %s454, %s455
        %s457 = smul.addr %s456, 8
        %s458 = scalar_lea.vmem %s5, %s457
        %s459 = smul.u32 16, %s37
        %p460 = scmp.eq.s32.totalorder %s38, 0
        // Predicated region
        $region53: #{tpu_custom_call.1} parent=35 // pred_check
          %p461 = pneg %p460
        $region54: #{tpu_custom_call.1} parent=35 // pred_check_branch
          %463 = sbr.rel (%p461) target = $region56
        $region55: #{tpu_custom_call.1} parent=35 // pred_region
          %vm464 = vcmask 7168
          %465 = vst.msk [vmem:[#allocation2] sm:$0xff] %vm464, -inf
          %466 = vst.msk [vmem:[#allocation2 + $0x8] sm:$0xff] %vm464, -inf
          %467 = vst.msk [vmem:[#allocation2 + $0x10] sm:$0xff] %vm464, -inf
          %468 = vst.msk [vmem:[#allocation2 + $0x18] sm:$0xff] %vm464, -inf
          %469 = vst.msk [vmem:[#allocation2 + $0x20] sm:$0xff] %vm464, -inf
          %470 = vst.msk [vmem:[#allocation2 + $0x28] sm:$0xff] %vm464, -inf
          %471 = vst.msk [vmem:[#allocation2 + $0x30] sm:$0xff] %vm464, -inf
          %472 = vst.msk [vmem:[#allocation2 + $0x38] sm:$0xff] %vm464, -inf
          %473 = vst.msk [vmem:[#allocation2 + $0x40] sm:$0xff] %vm464, -inf
          %474 = vst.msk [vmem:[#allocation2 + $0x48] sm:$0xff] %vm464, -inf
          %475 = vst.msk [vmem:[#allocation2 + $0x50] sm:$0xff] %vm464, -inf
          %476 = vst.msk [vmem:[#allocation2 + $0x58] sm:$0xff] %vm464, -inf
          %477 = vst.msk [vmem:[#allocation2 + $0x60] sm:$0xff] %vm464, -inf
          %478 = vst.msk [vmem:[#allocation2 + $0x68] sm:$0xff] %vm464, -inf
          %479 = vst.msk [vmem:[#allocation2 + $0x70] sm:$0xff] %vm464, -inf
          %480 = vst.msk [vmem:[#allocation2 + $0x78] sm:$0xff] %vm464, -inf
          %481 = vst.msk [vmem:[#allocation3] sm:$0xff] %vm464, 0.0
          %482 = vst.msk [vmem:[#allocation3 + $0x8] sm:$0xff] %vm464, 0.0
          %483 = vst.msk [vmem:[#allocation3 + $0x10] sm:$0xff] %vm464, 0.0
          %484 = vst.msk [vmem:[#allocation3 + $0x18] sm:$0xff] %vm464, 0.0
          %485 = vst.msk [vmem:[#allocation3 + $0x20] sm:$0xff] %vm464, 0.0
          %486 = vst.msk [vmem:[#allocation3 + $0x28] sm:$0xff] %vm464, 0.0
          %487 = vst.msk [vmem:[#allocation3 + $0x30] sm:$0xff] %vm464, 0.0
          %488 = vst.msk [vmem:[#allocation3 + $0x38] sm:$0xff] %vm464, 0.0
          %489 = vst.msk [vmem:[#allocation3 + $0x40] sm:$0xff] %vm464, 0.0
          %490 = vst.msk [vmem:[#allocation3 + $0x48] sm:$0xff] %vm464, 0.0
          %491 = vst.msk [vmem:[#allocation3 + $0x50] sm:$0xff] %vm464, 0.0
          %492 = vst.msk [vmem:[#allocation3 + $0x58] sm:$0xff] %vm464, 0.0
          %493 = vst.msk [vmem:[#allocation3 + $0x60] sm:$0xff] %vm464, 0.0
          %494 = vst.msk [vmem:[#allocation3 + $0x68] sm:$0xff] %vm464, 0.0
          %495 = vst.msk [vmem:[#allocation3 + $0x70] sm:$0xff] %vm464, 0.0
          %496 = vst.msk [vmem:[#allocation3 + $0x78] sm:$0xff] %vm464, 0.0
          %497 = vst [vmem:[#allocation4] sm:$0xff] 0.0
          %498 = vst [vmem:[#allocation4 + $0x8] sm:$0xff] 0.0
          %499 = vst [vmem:[#allocation4 + $0x10] sm:$0xff] 0.0
          %500 = vst [vmem:[#allocation4 + $0x18] sm:$0xff] 0.0
          %501 = vst [vmem:[#allocation4 + $0x20] sm:$0xff] 0.0
          %502 = vst [vmem:[#allocation4 + $0x28] sm:$0xff] 0.0
          %503 = vst [vmem:[#allocation4 + $0x30] sm:$0xff] 0.0
          %504 = vst [vmem:[#allocation4 + $0x38] sm:$0xff] 0.0
          %505 = vst [vmem:[#allocation4 + $0x40] sm:$0xff] 0.0
          %506 = vst [vmem:[#allocation4 + $0x48] sm:$0xff] 0.0
          %507 = vst [vmem:[#allocation4 + $0x50] sm:$0xff] 0.0
          %508 = vst [vmem:[#allocation4 + $0x58] sm:$0xff] 0.0
          %509 = vst [vmem:[#allocation4 + $0x60] sm:$0xff] 0.0
          %510 = vst [vmem:[#allocation4 + $0x68] sm:$0xff] 0.0
          %511 = vst [vmem:[#allocation4 + $0x70] sm:$0xff] 0.0
          %512 = vst [vmem:[#allocation4 + $0x78] sm:$0xff] 0.0
        $region56: #{tpu_custom_call.1} parent=35 // pred_fallthru
          _
        %v513 = vld [vmem:[%s359] sm:$0xff]
        %v514 = vld [vmem:[%s359 + $0x8] sm:$0xff]
        %v515 = vld [vmem:[%s359 + $0x10] sm:$0xff]
        %v516 = vld [vmem:[%s359 + $0x18] sm:$0xff]
        %v517 = vld [vmem:[%s359 + $0x20] sm:$0xff]
        %v518 = vld [vmem:[%s359 + $0x28] sm:$0xff]
        %v519 = vld [vmem:[%s359 + $0x30] sm:$0xff]
        %v520 = vld [vmem:[%s359 + $0x38] sm:$0xff]
        %v521 = vld [vmem:[%s359 + $0x40] sm:$0xff]
        %v522 = vld [vmem:[%s359 + $0x48] sm:$0xff]
        %v523 = vld [vmem:[%s359 + $0x50] sm:$0xff]
        %v524 = vld [vmem:[%s359 + $0x58] sm:$0xff]
        %v525 = vld [vmem:[%s359 + $0x60] sm:$0xff]
        %v526 = vld [vmem:[%s359 + $0x68] sm:$0xff]
        %v527 = vld [vmem:[%s359 + $0x70] sm:$0xff]
        %v528 = vld [vmem:[%s359 + $0x78] sm:$0xff]
        %v529 = vld [vmem:[%s368] sm:$0xff]
        %v530 = vld [vmem:[%s368 + $0x8] sm:$0xff]
        %v531 = vld [vmem:[%s368 + $0x10] sm:$0xff]
        %v532 = vld [vmem:[%s368 + $0x18] sm:$0xff]
        %v533 = vld [vmem:[%s368 + $0x20] sm:$0xff]
        %v534 = vld [vmem:[%s368 + $0x28] sm:$0xff]
        %v535 = vld [vmem:[%s368 + $0x30] sm:$0xff]
        %v536 = vld [vmem:[%s368 + $0x38] sm:$0xff]
        %v537 = vld [vmem:[%s368 + $0x40] sm:$0xff]
        %v538 = vld [vmem:[%s368 + $0x48] sm:$0xff]
        %v539 = vld [vmem:[%s368 + $0x50] sm:$0xff]
        %v540 = vld [vmem:[%s368 + $0x58] sm:$0xff]
        %v541 = vld [vmem:[%s368 + $0x60] sm:$0xff]
        %v542 = vld [vmem:[%s368 + $0x68] sm:$0xff]
        %v543 = vld [vmem:[%s368 + $0x70] sm:$0xff]
        %v544 = vld [vmem:[%s368 + $0x78] sm:$0xff]
        %545 = vmatprep.subr.mxu0 0.0
        %546 = vmatpush1.xpose.msra.mxu0 %v529
        %547 = vmatprep.subr.mxu0 0.0
        %548 = vmatpush1.xpose.msra.mxu0 %v530
        %549 = vmatprep.subr.mxu0 0.0
        %550 = vmatpush1.xpose.msra.mxu0 %v531
        %551 = vmatprep.subr.mxu0 0.0
        %552 = vmatpush1.xpose.msra.mxu0 %v532
        %553 = vmatprep.subr.mxu0 0.0
        %554 = vmatpush1.xpose.msra.mxu0 %v533
        %555 = vmatprep.subr.mxu0 0.0
        %556 = vmatpush1.xpose.msra.mxu0 %v534
        %557 = vmatprep.subr.mxu0 0.0
        %558 = vmatpush1.xpose.msra.mxu0 %v535
        %559 = vmatprep.subr.mxu0 0.0
        %560 = vmatpush1.xpose.msra.mxu0 %v536
        %561 = vmatprep.subr.mxu0 0.0
        %562 = vmatpush1.xpose.msra.mxu0 %v537
        %563 = vmatprep.subr.mxu0 0.0
        %564 = vmatpush1.xpose.msra.mxu0 %v538
        %565 = vmatprep.subr.mxu0 0.0
        %566 = vmatpush1.xpose.msra.mxu0 %v539
        %567 = vmatprep.subr.mxu0 0.0
        %568 = vmatpush1.xpose.msra.mxu0 %v540
        %569 = vmatprep.subr.mxu0 0.0
        %570 = vmatpush1.xpose.msra.mxu0 %v541
        %571 = vmatprep.subr.mxu0 0.0
        %572 = vmatpush1.xpose.msra.mxu0 %v542
        %573 = vmatprep.subr.mxu0 0.0
        %574 = vmatpush1.xpose.msra.mxu0 %v543
        %575 = vmatprep.subr.mxu0 0.0
        %576 = vmatpush1.xpose.msra.mxu0 %v544
        %577 = vmatprep.subr.mxu0 0.0
        %578 = vmatpush1.xpose.msra.mxu0 0.0
        %579 = vmatprep.subr.mxu0 0.0
        %580 = vmatpush1.xpose.msra.mxu0 0.0
        %581 = vmatprep.subr.mxu0 0.0
        %582 = vmatpush1.xpose.msra.mxu0 0.0
        %583 = vmatprep.subr.mxu0 0.0
        %584 = vmatpush1.xpose.msra.mxu0 0.0
        %585 = vmatprep.subr.mxu0 0.0
        %586 = vmatpush1.xpose.msra.mxu0 0.0
        %587 = vmatprep.subr.mxu0 0.0
        %588 = vmatpush1.xpose.msra.mxu0 0.0
        %589 = vmatprep.subr.mxu0 0.0
        %590 = vmatpush1.xpose.msra.mxu0 0.0
        %591 = vmatprep.subr.mxu0 0.0
        %592 = vmatpush1.xpose.msra.mxu0 0.0
        %593 = vmatprep.subr.mxu0 0.0
        %594 = vmatpush1.xpose.msra.mxu0 0.0
        %595 = vmatprep.subr.mxu0 0.0
        %596 = vmatpush1.xpose.msra.mxu0 0.0
        %597 = vmatprep.subr.mxu0 0.0
        %598 = vmatpush1.xpose.msra.mxu0 0.0
        %599 = vmatprep.subr.mxu0 0.0
        %600 = vmatpush1.xpose.msra.mxu0 0.0
        %601 = vmatprep.subr.mxu0 0.0
        %602 = vmatpush1.xpose.msra.mxu0 0.0
        %603 = vmatprep.subr.mxu0 0.0
        %604 = vmatpush1.xpose.msra.mxu0 0.0
        %605 = vmatprep.subr.mxu0 0.0
        %606 = vmatpush1.xpose.msra.mxu0 0.0
        %607 = vmatprep.subr.mxu0 0.0
        %608 = vmatpush1.xpose.msra.mxu0 0.0
        %609 = vmatprep.mubr.f32.mxu0 0.0
        %610 = vmatmul.mubr.f32.gmra.mrb[0].mxu0 %v513
        %v611 = vpop.f32.mrb[0].mxu0
        %v612 = vadd.f32 0.0, %v611
        %v613 = vpop.f32.mrb[0].mxu0
        %614 = vmatprep.mubr.f32.mxu0 0.0
        %615 = vmatmul.mubr.f32.gmra.mrb[0].mxu0 %v514
        %v616 = vpop.f32.mrb[0].mxu0
        %v617 = vadd.f32 0.0, %v616
        %v618 = vpop.f32.mrb[0].mxu0
        %619 = vmatprep.mubr.f32.mxu0 0.0
        %620 = vmatmul.mubr.f32.gmra.mrb[0].mxu0 %v515
        %v621 = vpop.f32.mrb[0].mxu0
        %v622 = vadd.f32 0.0, %v621
        %v623 = vpop.f32.mrb[0].mxu0
        %624 = vmatprep.mubr.f32.mxu0 0.0
        %625 = vmatmul.mubr.f32.gmra.mrb[0].mxu0 %v516
        %v626 = vpop.f32.mrb[0].mxu0
        %v627 = vadd.f32 0.0, %v626
        %v628 = vpop.f32.mrb[0].mxu0
        %629 = vmatprep.mubr.f32.mxu0 0.0
        %630 = vmatmul.mubr.f32.gmra.mrb[0].mxu0 %v517
        %v631 = vpop.f32.mrb[0].mxu0
        %v632 = vadd.f32 0.0, %v631
        %v633 = vpop.f32.mrb[0].mxu0
        %634 = vmatprep.mubr.f32.mxu0 0.0
        %635 = vmatmul.mubr.f32.gmra.mrb[0].mxu0 %v518
        %v636 = vpop.f32.mrb[0].mxu0
        %v637 = vadd.f32 0.0, %v636
        %v638 = vpop.f32.mrb[0].mxu0
        %639 = vmatprep.mubr.f32.mxu0 0.0
        %640 = vmatmul.mubr.f32.gmra.mrb[0].mxu0 %v519
        %v641 = vpop.f32.mrb[0].mxu0
        %v642 = vadd.f32 0.0, %v641
        %v643 = vpop.f32.mrb[0].mxu0
        %644 = vmatprep.mubr.f32.mxu0 0.0
        %645 = vmatmul.mubr.f32.gmra.mrb[0].mxu0 %v520
        %v646 = vpop.f32.mrb[0].mxu0
        %v647 = vadd.f32 0.0, %v646
        %v648 = vpop.f32.mrb[0].mxu0
        %649 = vmatprep.mubr.f32.mxu0 0.0
        %650 = vmatmul.mubr.f32.gmra.mrb[0].mxu0 %v521
        %v651 = vpop.f32.mrb[0].mxu0
        %v652 = vadd.f32 0.0, %v651
        %v653 = vpop.f32.mrb[0].mxu0
        %654 = vmatprep.mubr.f32.mxu0 0.0
        %655 = vmatmul.mubr.f32.gmra.mrb[0].mxu0 %v522
        %v656 = vpop.f32.mrb[0].mxu0
        %v657 = vadd.f32 0.0, %v656
        %v658 = vpop.f32.mrb[0].mxu0
        %659 = vmatprep.mubr.f32.mxu0 0.0
        %660 = vmatmul.mubr.f32.gmra.mrb[0].mxu0 %v523
        %v661 = vpop.f32.mrb[0].mxu0
        %v662 = vadd.f32 0.0, %v661
        %v663 = vpop.f32.mrb[0].mxu0
        %664 = vmatprep.mubr.f32.mxu0 0.0
        %665 = vmatmul.mubr.f32.gmra.mrb[0].mxu0 %v524
        %v666 = vpop.f32.mrb[0].mxu0
        %v667 = vadd.f32 0.0, %v666
        %v668 = vpop.f32.mrb[0].mxu0
        %669 = vmatprep.mubr.f32.mxu0 0.0
        %670 = vmatmul.mubr.f32.gmra.mrb[0].mxu0 %v525
        %v671 = vpop.f32.mrb[0].mxu0
        %v672 = vadd.f32 0.0, %v671
        %v673 = vpop.f32.mrb[0].mxu0
        %674 = vmatprep.mubr.f32.mxu0 0.0
        %675 = vmatmul.mubr.f32.gmra.mrb[0].mxu0 %v526
        %v676 = vpop.f32.mrb[0].mxu0
        %v677 = vadd.f32 0.0, %v676
        %v678 = vpop.f32.mrb[0].mxu0
        %679 = vmatprep.mubr.f32.mxu0 0.0
        %680 = vmatmul.mubr.f32.gmra.mrb[0].mxu0 %v527
        %v681 = vpop.f32.mrb[0].mxu0
        %v682 = vadd.f32 0.0, %v681
        %v683 = vpop.f32.mrb[0].mxu0
        %684 = vmatprep.mubr.f32.mxu0 0.0
        %685 = vmatmul.mubr.f32.gmra.mrb[0].mxu0 %v528
        %v686 = vpop.f32.mrb[0].mxu0
        %v687 = vadd.f32 0.0, %v686
        %v688 = vpop.f32.mrb[0].mxu0
        %689 = vdwg.mxu0
        %v690 = vmul.f32 %v612, 0.35355338
        %v691 = vmul.f32 %v617, 0.35355338
        %v692 = vmul.f32 %v622, 0.35355338
        %v693 = vmul.f32 %v627, 0.35355338
        %v694 = vmul.f32 %v632, 0.35355338
        %v695 = vmul.f32 %v637, 0.35355338
        %v696 = vmul.f32 %v642, 0.35355338
        %v697 = vmul.f32 %v647, 0.35355338
        %v698 = vmul.f32 %v652, 0.35355338
        %v699 = vmul.f32 %v657, 0.35355338
        %v700 = vmul.f32 %v662, 0.35355338
        %v701 = vmul.f32 %v667, 0.35355338
        %v702 = vmul.f32 %v672, 0.35355338
        %v703 = vmul.f32 %v677, 0.35355338
        %v704 = vmul.f32 %v682, 0.35355338
        %v705 = vmul.f32 %v687, 0.35355338
        %s706 = smul.u32 %s38, 128
        %v707 = vlaneseq
        %v708 = vand.u32 %v707, 127
        %v709 = vstv %s706
        %v710 = vadd.s32 %v709, %v708
        %v711 = vld [vmem:[%s386] sm:$0xff]
        %v712 = vld [vmem:[%s386 + $0x8] sm:$0xff]
        %v713 = vld [vmem:[%s386 + $0x10] sm:$0xff]
        %v714 = vld [vmem:[%s386 + $0x18] sm:$0xff]
        %v715 = vunpack.c.0.s8 %v711
        %v716 = vunpack.c.1.s8 %v711
        %v717 = vunpack.c.2.s8 %v711
        %v718 = vunpack.c.3.s8 %v711
        %v719 = vunpack.c.0.s8 %v712
        %v720 = vunpack.c.1.s8 %v712
        %v721 = vunpack.c.2.s8 %v712
        %v722 = vunpack.c.3.s8 %v712
        %v723 = vunpack.c.0.s8 %v713
        %v724 = vunpack.c.1.s8 %v713
        %v725 = vunpack.c.2.s8 %v713
        %v726 = vunpack.c.3.s8 %v713
        %v727 = vunpack.c.0.s8 %v714
        %v728 = vunpack.c.1.s8 %v714
        %v729 = vunpack.c.2.s8 %v714
        %v730 = vunpack.c.3.s8 %v714
        %vm731 = vcmp.ne.s32.totalorder %v715, 0
        %vm732 = vcmp.ne.s32.totalorder %v716, 0
        %vm733 = vcmp.ne.s32.totalorder %v717, 0
        %vm734 = vcmp.ne.s32.totalorder %v718, 0
        %vm735 = vcmp.ne.s32.totalorder %v719, 0
        %vm736 = vcmp.ne.s32.totalorder %v720, 0
        %vm737 = vcmp.ne.s32.totalorder %v721, 0
        %vm738 = vcmp.ne.s32.totalorder %v722, 0
        %vm739 = vcmp.ne.s32.totalorder %v723, 0
        %vm740 = vcmp.ne.s32.totalorder %v724, 0
        %vm741 = vcmp.ne.s32.totalorder %v725, 0
        %vm742 = vcmp.ne.s32.totalorder %v726, 0
        %vm743 = vcmp.ne.s32.totalorder %v727, 0
        %vm744 = vcmp.ne.s32.totalorder %v728, 0
        %vm745 = vcmp.ne.s32.totalorder %v729, 0
        %vm746 = vcmp.ne.s32.totalorder %v730, 0
        %v747 = vsel %vm731, %v690, -1e+12
        %v748 = vsel %vm732, %v691, -1e+12
        %v749 = vsel %vm733, %v692, -1e+12
        %v750 = vsel %vm734, %v693, -1e+12
        %v751 = vsel %vm735, %v694, -1e+12
        %v752 = vsel %vm736, %v695, -1e+12
        %v753 = vsel %vm737, %v696, -1e+12
        %v754 = vsel %vm738, %v697, -1e+12
        %v755 = vsel %vm739, %v698, -1e+12
        %v756 = vsel %vm740, %v699, -1e+12
        %v757 = vsel %vm741, %v700, -1e+12
        %v758 = vsel %vm742, %v701, -1e+12
        %v759 = vsel %vm743, %v702, -1e+12
        %v760 = vsel %vm744, %v703, -1e+12
        %v761 = vsel %vm745, %v704, -1e+12
        %v762 = vsel %vm746, %v705, -1e+12
        %v763 = vld [vmem:[#allocation2] sm:$0xff]
        %v764 = vld [vmem:[#allocation2 + $0x8] sm:$0xff]
        %v765 = vld [vmem:[#allocation2 + $0x10] sm:$0xff]
        %v766 = vld [vmem:[#allocation2 + $0x18] sm:$0xff]
        %v767 = vld [vmem:[#allocation2 + $0x20] sm:$0xff]
        %v768 = vld [vmem:[#allocation2 + $0x28] sm:$0xff]
        %v769 = vld [vmem:[#allocation2 + $0x30] sm:$0xff]
        %v770 = vld [vmem:[#allocation2 + $0x38] sm:$0xff]
        %v771 = vld [vmem:[#allocation2 + $0x40] sm:$0xff]
        %v772 = vld [vmem:[#allocation2 + $0x48] sm:$0xff]
        %v773 = vld [vmem:[#allocation2 + $0x50] sm:$0xff]
        %v774 = vld [vmem:[#allocation2 + $0x58] sm:$0xff]
        %v775 = vld [vmem:[#allocation2 + $0x60] sm:$0xff]
        %v776 = vld [vmem:[#allocation2 + $0x68] sm:$0xff]
        %v777 = vld [vmem:[#allocation2 + $0x70] sm:$0xff]
        %v778 = vld [vmem:[#allocation2 + $0x78] sm:$0xff]
        %779 = vmax.xlane.f32.xlu0 %v747
        %v780 = vpop.xlane.xlu0 %779
        %781 = vmax.xlane.f32.xlu0 %v748
        %v782 = vpop.xlane.xlu0 %781
        %783 = vmax.xlane.f32.xlu0 %v749
        %v784 = vpop.xlane.xlu0 %783
        %785 = vmax.xlane.f32.xlu0 %v750
        %v786 = vpop.xlane.xlu0 %785
        %787 = vmax.xlane.f32.xlu0 %v751
        %v788 = vpop.xlane.xlu0 %787
        %789 = vmax.xlane.f32.xlu0 %v752
        %v790 = vpop.xlane.xlu0 %789
        %791 = vmax.xlane.f32.xlu0 %v753
        %v792 = vpop.xlane.xlu0 %791
        %793 = vmax.xlane.f32.xlu0 %v754
        %v794 = vpop.xlane.xlu0 %793
        %795 = vmax.xlane.f32.xlu0 %v755
        %v796 = vpop.xlane.xlu0 %795
        %797 = vmax.xlane.f32.xlu0 %v756
        %v798 = vpop.xlane.xlu0 %797
        %799 = vmax.xlane.f32.xlu0 %v757
        %v800 = vpop.xlane.xlu0 %799
        %801 = vmax.xlane.f32.xlu0 %v758
        %v802 = vpop.xlane.xlu0 %801
        %803 = vmax.xlane.f32.xlu0 %v759
        %v804 = vpop.xlane.xlu0 %803
        %805 = vmax.xlane.f32.xlu0 %v760
        %v806 = vpop.xlane.xlu0 %805
        %807 = vmax.xlane.f32.xlu0 %v761
        %v808 = vpop.xlane.xlu0 %807
        %809 = vmax.xlane.f32.xlu0 %v762
        %v810 = vpop.xlane.xlu0 %809
        %v811 = vmax.f32 %v763, %v780
        %v812 = vmax.f32 %v764, %v782
        %v813 = vmax.f32 %v765, %v784
        %v814 = vmax.f32 %v766, %v786
        %v815 = vmax.f32 %v767, %v788
        %v816 = vmax.f32 %v768, %v790
        %v817 = vmax.f32 %v769, %v792
        %v818 = vmax.f32 %v770, %v794
        %v819 = vmax.f32 %v771, %v796
        %v820 = vmax.f32 %v772, %v798
        %v821 = vmax.f32 %v773, %v800
        %v822 = vmax.f32 %v774, %v802
        %v823 = vmax.f32 %v775, %v804
        %v824 = vmax.f32 %v776, %v806
        %v825 = vmax.f32 %v777, %v808
        %v826 = vmax.f32 %v778, %v810
        %v827 = vsub.f32 %v763, %v811
        %v828 = vsub.f32 %v764, %v812
        %v829 = vsub.f32 %v765, %v813
        %v830 = vsub.f32 %v766, %v814
        %v831 = vsub.f32 %v767, %v815
        %v832 = vsub.f32 %v768, %v816
        %v833 = vsub.f32 %v769, %v817
        %v834 = vsub.f32 %v770, %v818
        %v835 = vsub.f32 %v771, %v819
        %v836 = vsub.f32 %v772, %v820
        %v837 = vsub.f32 %v773, %v821
        %v838 = vsub.f32 %v774, %v822
        %v839 = vsub.f32 %v775, %v823
        %v840 = vsub.f32 %v776, %v824
        %v841 = vsub.f32 %v777, %v825
        %v842 = vsub.f32 %v778, %v826
        %v843 = vmul.f32 %v827, 1.442695
        %v844 = vpow.pop %v843
        %v845 = vmul.f32 %v828, 1.442695
        %v846 = vpow.pop %v845
        %v847 = vmul.f32 %v829, 1.442695
        %v848 = vpow.pop %v847
        %v849 = vmul.f32 %v830, 1.442695
        %v850 = vpow.pop %v849
        %v851 = vmul.f32 %v831, 1.442695
        %v852 = vpow.pop %v851
        %v853 = vmul.f32 %v832, 1.442695
        %v854 = vpow.pop %v853
        %v855 = vmul.f32 %v833, 1.442695
        %v856 = vpow.pop %v855
        %v857 = vmul.f32 %v834, 1.442695
        %v858 = vpow.pop %v857
        %v859 = vmul.f32 %v835, 1.442695
        %v860 = vpow.pop %v859
        %v861 = vmul.f32 %v836, 1.442695
        %v862 = vpow.pop %v861
        %v863 = vmul.f32 %v837, 1.442695
        %v864 = vpow.pop %v863
        %v865 = vmul.f32 %v838, 1.442695
        %v866 = vpow.pop %v865
        %v867 = vmul.f32 %v839, 1.442695
        %v868 = vpow.pop %v867
        %v869 = vmul.f32 %v840, 1.442695
        %v870 = vpow.pop %v869
        %v871 = vmul.f32 %v841, 1.442695
        %v872 = vpow.pop %v871
        %v873 = vmul.f32 %v842, 1.442695
        %v874 = vpow.pop %v873
        %876 = vset.pattern.permute.xlu0 0
        %877 = vperm.xlu0 %876, %v811
        %v878 = vpop.permute.xlu0 %877
        %881 = vset.pattern.permute.xlu0 0
        %882 = vperm.xlu0 %881, %v812
        %v883 = vpop.permute.xlu0 %882
        %886 = vset.pattern.permute.xlu0 0
        %887 = vperm.xlu0 %886, %v813
        %v888 = vpop.permute.xlu0 %887
        %891 = vset.pattern.permute.xlu0 0
        %892 = vperm.xlu0 %891, %v814
        %v893 = vpop.permute.xlu0 %892
        %896 = vset.pattern.permute.xlu0 0
        %897 = vperm.xlu0 %896, %v815
        %v898 = vpop.permute.xlu0 %897
        %901 = vset.pattern.permute.xlu0 0
        %902 = vperm.xlu0 %901, %v816
        %v903 = vpop.permute.xlu0 %902
        %906 = vset.pattern.permute.xlu0 0
        %907 = vperm.xlu0 %906, %v817
        %v908 = vpop.permute.xlu0 %907
        %911 = vset.pattern.permute.xlu0 0
        %912 = vperm.xlu0 %911, %v818
        %v913 = vpop.permute.xlu0 %912
        %916 = vset.pattern.permute.xlu0 0
        %917 = vperm.xlu0 %916, %v819
        %v918 = vpop.permute.xlu0 %917
        %921 = vset.pattern.permute.xlu0 0
        %922 = vperm.xlu0 %921, %v820
        %v923 = vpop.permute.xlu0 %922
        %926 = vset.pattern.permute.xlu0 0
        %927 = vperm.xlu0 %926, %v821
        %v928 = vpop.permute.xlu0 %927
        %931 = vset.pattern.permute.xlu0 0
        %932 = vperm.xlu0 %931, %v822
        %v933 = vpop.permute.xlu0 %932
        %936 = vset.pattern.permute.xlu0 0
        %937 = vperm.xlu0 %936, %v823
        %v938 = vpop.permute.xlu0 %937
        %941 = vset.pattern.permute.xlu0 0
        %942 = vperm.xlu0 %941, %v824
        %v943 = vpop.permute.xlu0 %942
        %946 = vset.pattern.permute.xlu0 0
        %947 = vperm.xlu0 %946, %v825
        %v948 = vpop.permute.xlu0 %947
        %951 = vset.pattern.permute.xlu0 0
        %952 = vperm.xlu0 %951, %v826
        %v953 = vpop.permute.xlu0 %952
        %v955 = vsub.f32 %v747, %v878
        %v956 = vsub.f32 %v748, %v883
        %v957 = vsub.f32 %v749, %v888
        %v958 = vsub.f32 %v750, %v893
        %v959 = vsub.f32 %v751, %v898
        %v960 = vsub.f32 %v752, %v903
        %v961 = vsub.f32 %v753, %v908
        %v962 = vsub.f32 %v754, %v913
        %v963 = vsub.f32 %v755, %v918
        %v964 = vsub.f32 %v756, %v923
        %v965 = vsub.f32 %v757, %v928
        %v966 = vsub.f32 %v758, %v933
        %v967 = vsub.f32 %v759, %v938
        %v968 = vsub.f32 %v760, %v943
        %v969 = vsub.f32 %v761, %v948
        %v970 = vsub.f32 %v762, %v953
        %v971 = vmul.f32 %v955, 1.442695
        %v972 = vpow.pop %v971
        %v973 = vmul.f32 %v956, 1.442695
        %v974 = vpow.pop %v973
        %v975 = vmul.f32 %v957, 1.442695
        %v976 = vpow.pop %v975
        %v977 = vmul.f32 %v958, 1.442695
        %v978 = vpow.pop %v977
        %v979 = vmul.f32 %v959, 1.442695
        %v980 = vpow.pop %v979
        %v981 = vmul.f32 %v960, 1.442695
        %v982 = vpow.pop %v981
        %v983 = vmul.f32 %v961, 1.442695
        %v984 = vpow.pop %v983
        %v985 = vmul.f32 %v962, 1.442695
        %v986 = vpow.pop %v985
        %v987 = vmul.f32 %v963, 1.442695
        %v988 = vpow.pop %v987
        %v989 = vmul.f32 %v964, 1.442695
        %v990 = vpow.pop %v989
        %v991 = vmul.f32 %v965, 1.442695
        %v992 = vpow.pop %v991
        %v993 = vmul.f32 %v966, 1.442695
        %v994 = vpow.pop %v993
        %v995 = vmul.f32 %v967, 1.442695
        %v996 = vpow.pop %v995
        %v997 = vmul.f32 %v968, 1.442695
        %v998 = vpow.pop %v997
        %v999 = vmul.f32 %v969, 1.442695
        %v1000 = vpow.pop %v999
        %v1001 = vmul.f32 %v970, 1.442695
        %v1002 = vpow.pop %v1001
        %vm1003 = vcmp.lt.s32.totalorder %v710, 8
        %v1004 = vsel %vm1003, %v972, 0.0
        %v1005 = vsel %vm1003, %v974, 0.0
        %v1006 = vsel %vm1003, %v976, 0.0
        %v1007 = vsel %vm1003, %v978, 0.0
        %v1008 = vsel %vm1003, %v980, 0.0
        %v1009 = vsel %vm1003, %v982, 0.0
        %v1010 = vsel %vm1003, %v984, 0.0
        %v1011 = vsel %vm1003, %v986, 0.0
        %v1012 = vsel %vm1003, %v988, 0.0
        %v1013 = vsel %vm1003, %v990, 0.0
        %v1014 = vsel %vm1003, %v992, 0.0
        %v1015 = vsel %vm1003, %v994, 0.0
        %v1016 = vsel %vm1003, %v996, 0.0
        %v1017 = vsel %vm1003, %v998, 0.0
        %v1018 = vsel %vm1003, %v1000, 0.0
        %v1019 = vsel %vm1003, %v1002, 0.0
        %v1020 = vld [vmem:[%s377] sm:$0xff]
        %v1021 = vld [vmem:[%s377 + $0x8] sm:$0xff]
        %v1022 = vld [vmem:[%s377 + $0x10] sm:$0xff]
        %v1023 = vld [vmem:[%s377 + $0x18] sm:$0xff]
        %v1024 = vld [vmem:[%s377 + $0x20] sm:$0xff]
        %v1025 = vld [vmem:[%s377 + $0x28] sm:$0xff]
        %v1026 = vld [vmem:[%s377 + $0x30] sm:$0xff]
        %v1027 = vld [vmem:[%s377 + $0x38] sm:$0xff]
        %v1028 = vld [vmem:[%s377 + $0x40] sm:$0xff]
        %v1029 = vld [vmem:[%s377 + $0x48] sm:$0xff]
        %v1030 = vld [vmem:[%s377 + $0x50] sm:$0xff]
        %v1031 = vld [vmem:[%s377 + $0x58] sm:$0xff]
        %v1032 = vld [vmem:[%s377 + $0x60] sm:$0xff]
        %v1033 = vld [vmem:[%s377 + $0x68] sm:$0xff]
        %v1034 = vld [vmem:[%s377 + $0x70] sm:$0xff]
        %v1035 = vld [vmem:[%s377 + $0x78] sm:$0xff]
        %v1036 = vld [vmem:[#allocation3] sm:$0xff]
        %v1037 = vld [vmem:[#allocation3 + $0x8] sm:$0xff]
        %v1038 = vld [vmem:[#allocation3 + $0x10] sm:$0xff]
        %v1039 = vld [vmem:[#allocation3 + $0x18] sm:$0xff]
        %v1040 = vld [vmem:[#allocation3 + $0x20] sm:$0xff]
        %v1041 = vld [vmem:[#allocation3 + $0x28] sm:$0xff]
        %v1042 = vld [vmem:[#allocation3 + $0x30] sm:$0xff]
        %v1043 = vld [vmem:[#allocation3 + $0x38] sm:$0xff]
        %v1044 = vld [vmem:[#allocation3 + $0x40] sm:$0xff]
        %v1045 = vld [vmem:[#allocation3 + $0x48] sm:$0xff]
        %v1046 = vld [vmem:[#allocation3 + $0x50] sm:$0xff]
        %v1047 = vld [vmem:[#allocation3 + $0x58] sm:$0xff]
        %v1048 = vld [vmem:[#allocation3 + $0x60] sm:$0xff]
        %v1049 = vld [vmem:[#allocation3 + $0x68] sm:$0xff]
        %v1050 = vld [vmem:[#allocation3 + $0x70] sm:$0xff]
        %v1051 = vld [vmem:[#allocation3 + $0x78] sm:$0xff]
        %v1052 = vmul.f32 %v844, %v1036
        %v1053 = vmul.f32 %v846, %v1037
        %v1054 = vmul.f32 %v848, %v1038
        %v1055 = vmul.f32 %v850, %v1039
        %v1056 = vmul.f32 %v852, %v1040
        %v1057 = vmul.f32 %v854, %v1041
        %v1058 = vmul.f32 %v856, %v1042
        %v1059 = vmul.f32 %v858, %v1043
        %v1060 = vmul.f32 %v860, %v1044
        %v1061 = vmul.f32 %v862, %v1045
        %v1062 = vmul.f32 %v864, %v1046
        %v1063 = vmul.f32 %v866, %v1047
        %v1064 = vmul.f32 %v868, %v1048
        %v1065 = vmul.f32 %v870, %v1049
        %v1066 = vmul.f32 %v872, %v1050
        %v1067 = vmul.f32 %v874, %v1051
        %1068 = vadd.xlane.f32.xlu0 %v1004
        %v1069 = vpop.xlane.xlu0 %1068
        %1070 = vadd.xlane.f32.xlu0 %v1005
        %v1071 = vpop.xlane.xlu0 %1070
        %1072 = vadd.xlane.f32.xlu0 %v1006
        %v1073 = vpop.xlane.xlu0 %1072
        %1074 = vadd.xlane.f32.xlu0 %v1007
        %v1075 = vpop.xlane.xlu0 %1074
        %1076 = vadd.xlane.f32.xlu0 %v1008
        %v1077 = vpop.xlane.xlu0 %1076
        %1078 = vadd.xlane.f32.xlu0 %v1009
        %v1079 = vpop.xlane.xlu0 %1078
        %1080 = vadd.xlane.f32.xlu0 %v1010
        %v1081 = vpop.xlane.xlu0 %1080
        %1082 = vadd.xlane.f32.xlu0 %v1011
        %v1083 = vpop.xlane.xlu0 %1082
        %1084 = vadd.xlane.f32.xlu0 %v1012
        %v1085 = vpop.xlane.xlu0 %1084
        %1086 = vadd.xlane.f32.xlu0 %v1013
        %v1087 = vpop.xlane.xlu0 %1086
        %1088 = vadd.xlane.f32.xlu0 %v1014
        %v1089 = vpop.xlane.xlu0 %1088
        %1090 = vadd.xlane.f32.xlu0 %v1015
        %v1091 = vpop.xlane.xlu0 %1090
        %1092 = vadd.xlane.f32.xlu0 %v1016
        %v1093 = vpop.xlane.xlu0 %1092
        %1094 = vadd.xlane.f32.xlu0 %v1017
        %v1095 = vpop.xlane.xlu0 %1094
        %1096 = vadd.xlane.f32.xlu0 %v1018
        %v1097 = vpop.xlane.xlu0 %1096
        %1098 = vadd.xlane.f32.xlu0 %v1019
        %v1099 = vpop.xlane.xlu0 %1098
        %v1100 = vadd.f32 %v1052, %v1069
        %v1101 = vadd.f32 %v1053, %v1071
        %v1102 = vadd.f32 %v1054, %v1073
        %v1103 = vadd.f32 %v1055, %v1075
        %v1104 = vadd.f32 %v1056, %v1077
        %v1105 = vadd.f32 %v1057, %v1079
        %v1106 = vadd.f32 %v1058, %v1081
        %v1107 = vadd.f32 %v1059, %v1083
        %v1108 = vadd.f32 %v1060, %v1085
        %v1109 = vadd.f32 %v1061, %v1087
        %v1110 = vadd.f32 %v1062, %v1089
        %v1111 = vadd.f32 %v1063, %v1091
        %v1112 = vadd.f32 %v1064, %v1093
        %v1113 = vadd.f32 %v1065, %v1095
        %v1114 = vadd.f32 %v1066, %v1097
        %v1115 = vadd.f32 %v1067, %v1099
        %vm1116 = vcmask 7168
        %1117 = vst.msk [vmem:[#allocation3] sm:$0xff] %vm1116, %v1100
        %1118 = vst.msk [vmem:[#allocation3 + $0x8] sm:$0xff] %vm1116, %v1101
        %1119 = vst.msk [vmem:[#allocation3 + $0x10] sm:$0xff] %vm1116, %v1102
        %1120 = vst.msk [vmem:[#allocation3 + $0x18] sm:$0xff] %vm1116, %v1103
        %1121 = vst.msk [vmem:[#allocation3 + $0x20] sm:$0xff] %vm1116, %v1104
        %1122 = vst.msk [vmem:[#allocation3 + $0x28] sm:$0xff] %vm1116, %v1105
        %1123 = vst.msk [vmem:[#allocation3 + $0x30] sm:$0xff] %vm1116, %v1106
        %1124 = vst.msk [vmem:[#allocation3 + $0x38] sm:$0xff] %vm1116, %v1107
        %1125 = vst.msk [vmem:[#allocation3 + $0x40] sm:$0xff] %vm1116, %v1108
        %1126 = vst.msk [vmem:[#allocation3 + $0x48] sm:$0xff] %vm1116, %v1109
        %1127 = vst.msk [vmem:[#allocation3 + $0x50] sm:$0xff] %vm1116, %v1110
        %1128 = vst.msk [vmem:[#allocation3 + $0x58] sm:$0xff] %vm1116, %v1111
        %1129 = vst.msk [vmem:[#allocation3 + $0x60] sm:$0xff] %vm1116, %v1112
        %1130 = vst.msk [vmem:[#allocation3 + $0x68] sm:$0xff] %vm1116, %v1113
        %1131 = vst.msk [vmem:[#allocation3 + $0x70] sm:$0xff] %vm1116, %v1114
        %1132 = vst.msk [vmem:[#allocation3 + $0x78] sm:$0xff] %vm1116, %v1115
        %v1133 = vld [vmem:[#allocation4] sm:$0xff]
        %v1134 = vld [vmem:[#allocation4 + $0x8] sm:$0xff]
        %v1135 = vld [vmem:[#allocation4 + $0x10] sm:$0xff]
        %v1136 = vld [vmem:[#allocation4 + $0x18] sm:$0xff]
        %v1137 = vld [vmem:[#allocation4 + $0x20] sm:$0xff]
        %v1138 = vld [vmem:[#allocation4 + $0x28] sm:$0xff]
        %v1139 = vld [vmem:[#allocation4 + $0x30] sm:$0xff]
        %v1140 = vld [vmem:[#allocation4 + $0x38] sm:$0xff]
        %v1141 = vld [vmem:[#allocation4 + $0x40] sm:$0xff]
        %v1142 = vld [vmem:[#allocation4 + $0x48] sm:$0xff]
        %v1143 = vld [vmem:[#allocation4 + $0x50] sm:$0xff]
        %v1144 = vld [vmem:[#allocation4 + $0x58] sm:$0xff]
        %v1145 = vld [vmem:[#allocation4 + $0x60] sm:$0xff]
        %v1146 = vld [vmem:[#allocation4 + $0x68] sm:$0xff]
        %v1147 = vld [vmem:[#allocation4 + $0x70] sm:$0xff]
        %v1148 = vld [vmem:[#allocation4 + $0x78] sm:$0xff]
        %1150 = vset.pattern.permute.xlu0 0
        %1151 = vperm.xlu0 %1150, %v844
        %v1152 = vpop.permute.xlu0 %1151
        %1155 = vset.pattern.permute.xlu0 0
        %1156 = vperm.xlu0 %1155, %v846
        %v1157 = vpop.permute.xlu0 %1156
        %1160 = vset.pattern.permute.xlu0 0
        %1161 = vperm.xlu0 %1160, %v848
        %v1162 = vpop.permute.xlu0 %1161
        %1165 = vset.pattern.permute.xlu0 0
        %1166 = vperm.xlu0 %1165, %v850
        %v1167 = vpop.permute.xlu0 %1166
        %1170 = vset.pattern.permute.xlu0 0
        %1171 = vperm.xlu0 %1170, %v852
        %v1172 = vpop.permute.xlu0 %1171
        %1175 = vset.pattern.permute.xlu0 0
        %1176 = vperm.xlu0 %1175, %v854
        %v1177 = vpop.permute.xlu0 %1176
        %1180 = vset.pattern.permute.xlu0 0
        %1181 = vperm.xlu0 %1180, %v856
        %v1182 = vpop.permute.xlu0 %1181
        %1185 = vset.pattern.permute.xlu0 0
        %1186 = vperm.xlu0 %1185, %v858
        %v1187 = vpop.permute.xlu0 %1186
        %1190 = vset.pattern.permute.xlu0 0
        %1191 = vperm.xlu0 %1190, %v860
        %v1192 = vpop.permute.xlu0 %1191
        %1195 = vset.pattern.permute.xlu0 0
        %1196 = vperm.xlu0 %1195, %v862
        %v1197 = vpop.permute.xlu0 %1196
        %1200 = vset.pattern.permute.xlu0 0
        %1201 = vperm.xlu0 %1200, %v864
        %v1202 = vpop.permute.xlu0 %1201
        %1205 = vset.pattern.permute.xlu0 0
        %1206 = vperm.xlu0 %1205, %v866
        %v1207 = vpop.permute.xlu0 %1206
        %1210 = vset.pattern.permute.xlu0 0
        %1211 = vperm.xlu0 %1210, %v868
        %v1212 = vpop.permute.xlu0 %1211
        %1215 = vset.pattern.permute.xlu0 0
        %1216 = vperm.xlu0 %1215, %v870
        %v1217 = vpop.permute.xlu0 %1216
        %1220 = vset.pattern.permute.xlu0 0
        %1221 = vperm.xlu0 %1220, %v872
        %v1222 = vpop.permute.xlu0 %1221
        %1225 = vset.pattern.permute.xlu0 0
        %1226 = vperm.xlu0 %1225, %v874
        %v1227 = vpop.permute.xlu0 %1226
        %v1229 = vmul.f32 %v1152, %v1133
        %v1230 = vmul.f32 %v1157, %v1134
        %v1231 = vmul.f32 %v1162, %v1135
        %v1232 = vmul.f32 %v1167, %v1136
        %v1233 = vmul.f32 %v1172, %v1137
        %v1234 = vmul.f32 %v1177, %v1138
        %v1235 = vmul.f32 %v1182, %v1139
        %v1236 = vmul.f32 %v1187, %v1140
        %v1237 = vmul.f32 %v1192, %v1141
        %v1238 = vmul.f32 %v1197, %v1142
        %v1239 = vmul.f32 %v1202, %v1143
        %v1240 = vmul.f32 %v1207, %v1144
        %v1241 = vmul.f32 %v1212, %v1145
        %v1242 = vmul.f32 %v1217, %v1146
        %v1243 = vmul.f32 %v1222, %v1147
        %v1244 = vmul.f32 %v1227, %v1148
        %1245 = vmatprep.subr.mxu0 0.0
        %1246 = vmatpush1.msra.mxu0 %v1020
        %1247 = vmatprep.subr.mxu0 0.0
        %1248 = vmatpush1.msra.mxu0 %v1021
        %1249 = vmatprep.subr.mxu0 0.0
        %1250 = vmatpush1.msra.mxu0 %v1022
        %1251 = vmatprep.subr.mxu0 0.0
        %1252 = vmatpush1.msra.mxu0 %v1023
        %1253 = vmatprep.subr.mxu0 0.0
        %1254 = vmatpush1.msra.mxu0 %v1024
        %1255 = vmatprep.subr.mxu0 0.0
        %1256 = vmatpush1.msra.mxu0 %v1025
        %1257 = vmatprep.subr.mxu0 0.0
        %1258 = vmatpush1.msra.mxu0 %v1026
        %1259 = vmatprep.subr.mxu0 0.0
        %1260 = vmatpush1.msra.mxu0 %v1027
        %1261 = vmatprep.subr.mxu0 0.0
        %1262 = vmatpush1.msra.mxu0 %v1028
        %1263 = vmatprep.subr.mxu0 0.0
        %1264 = vmatpush1.msra.mxu0 %v1029
        %1265 = vmatprep.subr.mxu0 0.0
        %1266 = vmatpush1.msra.mxu0 %v1030
        %1267 = vmatprep.subr.mxu0 0.0
        %1268 = vmatpush1.msra.mxu0 %v1031
        %1269 = vmatprep.subr.mxu0 0.0
        %1270 = vmatpush1.msra.mxu0 %v1032
        %1271 = vmatprep.subr.mxu0 0.0
        %1272 = vmatpush1.msra.mxu0 %v1033
        %1273 = vmatprep.subr.mxu0 0.0
        %1274 = vmatpush1.msra.mxu0 %v1034
        %1275 = vmatprep.subr.mxu0 0.0
        %1276 = vmatpush1.msra.mxu0 %v1035
        %1277 = vmatprep.subr.mxu0 0.0
        %1278 = vmatpush1.msra.mxu0 0.0
        %1279 = vmatprep.subr.mxu0 0.0
        %1280 = vmatpush1.msra.mxu0 0.0
        %1281 = vmatprep.subr.mxu0 0.0
        %1282 = vmatpush1.msra.mxu0 0.0
        %1283 = vmatprep.subr.mxu0 0.0
        %1284 = vmatpush1.msra.mxu0 0.0
        %1285 = vmatprep.subr.mxu0 0.0
        %1286 = vmatpush1.msra.mxu0 0.0
        %1287 = vmatprep.subr.mxu0 0.0
        %1288 = vmatpush1.msra.mxu0 0.0
        %1289 = vmatprep.subr.mxu0 0.0
        %1290 = vmatpush1.msra.mxu0 0.0
        %1291 = vmatprep.subr.mxu0 0.0
        %1292 = vmatpush1.msra.mxu0 0.0
        %1293 = vmatprep.subr.mxu0 0.0
        %1294 = vmatpush1.msra.mxu0 0.0
        %1295 = vmatprep.subr.mxu0 0.0
        %1296 = vmatpush1.msra.mxu0 0.0
        %1297 = vmatprep.subr.mxu0 0.0
        %1298 = vmatpush1.msra.mxu0 0.0
        %1299 = vmatprep.subr.mxu0 0.0
        %1300 = vmatpush1.msra.mxu0 0.0
        %1301 = vmatprep.subr.mxu0 0.0
        %1302 = vmatpush1.msra.mxu0 0.0
        %1303 = vmatprep.subr.mxu0 0.0
        %1304 = vmatpush1.msra.mxu0 0.0
        %1305 = vmatprep.subr.mxu0 0.0
        %1306 = vmatpush1.msra.mxu0 0.0
        %1307 = vmatprep.subr.mxu0 0.0
        %1308 = vmatpush1.msra.mxu0 0.0
        %1309 = vmatprep.mubr.f32.mxu0 0.0
        %1310 = vmatmul.mubr.f32.gmra.mrb[0].mxu0 %v1004
        %v1311 = vpop.f32.mrb[0].mxu0
        %v1312 = vadd.f32 0.0, %v1311
        %v1313 = vpop.f32.mrb[0].mxu0
        %1314 = vmatprep.mubr.f32.mxu0 0.0
        %1315 = vmatmul.mubr.f32.gmra.mrb[0].mxu0 %v1005
        %v1316 = vpop.f32.mrb[0].mxu0
        %v1317 = vadd.f32 0.0, %v1316
        %v1318 = vpop.f32.mrb[0].mxu0
        %1319 = vmatprep.mubr.f32.mxu0 0.0
        %1320 = vmatmul.mubr.f32.gmra.mrb[0].mxu0 %v1006
        %v1321 = vpop.f32.mrb[0].mxu0
        %v1322 = vadd.f32 0.0, %v1321
        %v1323 = vpop.f32.mrb[0].mxu0
        %1324 = vmatprep.mubr.f32.mxu0 0.0
        %1325 = vmatmul.mubr.f32.gmra.mrb[0].mxu0 %v1007
        %v1326 = vpop.f32.mrb[0].mxu0
        %v1327 = vadd.f32 0.0, %v1326
        %v1328 = vpop.f32.mrb[0].mxu0
        %1329 = vmatprep.mubr.f32.mxu0 0.0
        %1330 = vmatmul.mubr.f32.gmra.mrb[0].mxu0 %v1008
        %v1331 = vpop.f32.mrb[0].mxu0
        %v1332 = vadd.f32 0.0, %v1331
        %v1333 = vpop.f32.mrb[0].mxu0
        %1334 = vmatprep.mubr.f32.mxu0 0.0
        %1335 = vmatmul.mubr.f32.gmra.mrb[0].mxu0 %v1009
        %v1336 = vpop.f32.mrb[0].mxu0
        %v1337 = vadd.f32 0.0, %v1336
        %v1338 = vpop.f32.mrb[0].mxu0
        %1339 = vmatprep.mubr.f32.mxu0 0.0
        %1340 = vmatmul.mubr.f32.gmra.mrb[0].mxu0 %v1010
        %v1341 = vpop.f32.mrb[0].mxu0
        %v1342 = vadd.f32 0.0, %v1341
        %v1343 = vpop.f32.mrb[0].mxu0
        %1344 = vmatprep.mubr.f32.mxu0 0.0
        %1345 = vmatmul.mubr.f32.gmra.mrb[0].mxu0 %v1011
        %v1346 = vpop.f32.mrb[0].mxu0
        %v1347 = vadd.f32 0.0, %v1346
        %v1348 = vpop.f32.mrb[0].mxu0
        %1349 = vmatprep.mubr.f32.mxu0 0.0
        %1350 = vmatmul.mubr.f32.gmra.mrb[0].mxu0 %v1012
        %v1351 = vpop.f32.mrb[0].mxu0
        %v1352 = vadd.f32 0.0, %v1351
        %v1353 = vpop.f32.mrb[0].mxu0
        %1354 = vmatprep.mubr.f32.mxu0 0.0
        %1355 = vmatmul.mubr.f32.gmra.mrb[0].mxu0 %v1013
        %v1356 = vpop.f32.mrb[0].mxu0
        %v1357 = vadd.f32 0.0, %v1356
        %v1358 = vpop.f32.mrb[0].mxu0
        %1359 = vmatprep.mubr.f32.mxu0 0.0
        %1360 = vmatmul.mubr.f32.gmra.mrb[0].mxu0 %v1014
        %v1361 = vpop.f32.mrb[0].mxu0
        %v1362 = vadd.f32 0.0, %v1361
        %v1363 = vpop.f32.mrb[0].mxu0
        %1364 = vmatprep.mubr.f32.mxu0 0.0
        %1365 = vmatmul.mubr.f32.gmra.mrb[0].mxu0 %v1015
        %v1366 = vpop.f32.mrb[0].mxu0
        %v1367 = vadd.f32 0.0, %v1366
        %v1368 = vpop.f32.mrb[0].mxu0
        %1369 = vmatprep.mubr.f32.mxu0 0.0
        %1370 = vmatmul.mubr.f32.gmra.mrb[0].mxu0 %v1016
        %v1371 = vpop.f32.mrb[0].mxu0
        %v1372 = vadd.f32 0.0, %v1371
        %v1373 = vpop.f32.mrb[0].mxu0
        %1374 = vmatprep.mubr.f32.mxu0 0.0
        %1375 = vmatmul.mubr.f32.gmra.mrb[0].mxu0 %v1017
        %v1376 = vpop.f32.mrb[0].mxu0
        %v1377 = vadd.f32 0.0, %v1376
        %v1378 = vpop.f32.mrb[0].mxu0
        %1379 = vmatprep.mubr.f32.mxu0 0.0
        %1380 = vmatmul.mubr.f32.gmra.mrb[0].mxu0 %v1018
        %v1381 = vpop.f32.mrb[0].mxu0
        %v1382 = vadd.f32 0.0, %v1381
        %v1383 = vpop.f32.mrb[0].mxu0
        %1384 = vmatprep.mubr.f32.mxu0 0.0
        %1385 = vmatmul.mubr.f32.gmra.mrb[0].mxu0 %v1019
        %v1386 = vpop.f32.mrb[0].mxu0
        %v1387 = vadd.f32 0.0, %v1386
        %v1388 = vpop.f32.mrb[0].mxu0
        %1389 = vdwg.mxu0
        %v1390 = vadd.f32 %v1229, %v1312
        %v1391 = vadd.f32 %v1230, %v1317
        %v1392 = vadd.f32 %v1231, %v1322
        %v1393 = vadd.f32 %v1232, %v1327
        %v1394 = vadd.f32 %v1233, %v1332
        %v1395 = vadd.f32 %v1234, %v1337
        %v1396 = vadd.f32 %v1235, %v1342
        %v1397 = vadd.f32 %v1236, %v1347
        %v1398 = vadd.f32 %v1237, %v1352
        %v1399 = vadd.f32 %v1238, %v1357
        %v1400 = vadd.f32 %v1239, %v1362
        %v1401 = vadd.f32 %v1240, %v1367
        %v1402 = vadd.f32 %v1241, %v1372
        %v1403 = vadd.f32 %v1242, %v1377
        %v1404 = vadd.f32 %v1243, %v1382
        %v1405 = vadd.f32 %v1244, %v1387
        %1406 = vst [vmem:[#allocation4] sm:$0xff] %v1390
        %1407 = vst [vmem:[#allocation4 + $0x8] sm:$0xff] %v1391
        %1408 = vst [vmem:[#allocation4 + $0x10] sm:$0xff] %v1392
        %1409 = vst [vmem:[#allocation4 + $0x18] sm:$0xff] %v1393
        %1410 = vst [vmem:[#allocation4 + $0x20] sm:$0xff] %v1394
        %1411 = vst [vmem:[#allocation4 + $0x28] sm:$0xff] %v1395
        %1412 = vst [vmem:[#allocation4 + $0x30] sm:$0xff] %v1396
        %1413 = vst [vmem:[#allocation4 + $0x38] sm:$0xff] %v1397
        %1414 = vst [vmem:[#allocation4 + $0x40] sm:$0xff] %v1398
        %1415 = vst [vmem:[#allocation4 + $0x48] sm:$0xff] %v1399
        %1416 = vst [vmem:[#allocation4 + $0x50] sm:$0xff] %v1400
        %1417 = vst [vmem:[#allocation4 + $0x58] sm:$0xff] %v1401
        %1418 = vst [vmem:[#allocation4 + $0x60] sm:$0xff] %v1402
        %1419 = vst [vmem:[#allocation4 + $0x68] sm:$0xff] %v1403
        %1420 = vst [vmem:[#allocation4 + $0x70] sm:$0xff] %v1404
        %1421 = vst [vmem:[#allocation4 + $0x78] sm:$0xff] %v1405
        %1422 = vst.msk [vmem:[#allocation2] sm:$0xff] %vm1116, %v811
        %1423 = vst.msk [vmem:[#allocation2 + $0x8] sm:$0xff] %vm1116, %v812
        %1424 = vst.msk [vmem:[#allocation2 + $0x10] sm:$0xff] %vm1116, %v813
        %1425 = vst.msk [vmem:[#allocation2 + $0x18] sm:$0xff] %vm1116, %v814
        %1426 = vst.msk [vmem:[#allocation2 + $0x20] sm:$0xff] %vm1116, %v815
        %1427 = vst.msk [vmem:[#allocation2 + $0x28] sm:$0xff] %vm1116, %v816
        %1428 = vst.msk [vmem:[#allocation2 + $0x30] sm:$0xff] %vm1116, %v817
        %1429 = vst.msk [vmem:[#allocation2 + $0x38] sm:$0xff] %vm1116, %v818
        %1430 = vst.msk [vmem:[#allocation2 + $0x40] sm:$0xff] %vm1116, %v819
        %1431 = vst.msk [vmem:[#allocation2 + $0x48] sm:$0xff] %vm1116, %v820
        %1432 = vst.msk [vmem:[#allocation2 + $0x50] sm:$0xff] %vm1116, %v821
        %1433 = vst.msk [vmem:[#allocation2 + $0x58] sm:$0xff] %vm1116, %v822
        %1434 = vst.msk [vmem:[#allocation2 + $0x60] sm:$0xff] %vm1116, %v823
        %1435 = vst.msk [vmem:[#allocation2 + $0x68] sm:$0xff] %vm1116, %v824
        %1436 = vst.msk [vmem:[#allocation2 + $0x70] sm:$0xff] %vm1116, %v825
        %1437 = vst.msk [vmem:[#allocation2 + $0x78] sm:$0xff] %vm1116, %v826
        // Predicated region
        $region57: #{tpu_custom_call.1} parent=35 // pred_check
          %p1438 = pneg %p460
        $region58: #{tpu_custom_call.1} parent=35 // pred_check_branch
          %1440 = sbr.rel (%p1438) target = $region60
        $region59: #{tpu_custom_call.1} parent=35 // pred_region
          %v1441 = vld [vmem:[#allocation4] sm:$0xff]
          %v1442 = vld [vmem:[#allocation4 + $0x8] sm:$0xff]
          %v1443 = vld [vmem:[#allocation4 + $0x10] sm:$0xff]
          %v1444 = vld [vmem:[#allocation4 + $0x18] sm:$0xff]
          %v1445 = vld [vmem:[#allocation4 + $0x20] sm:$0xff]
          %v1446 = vld [vmem:[#allocation4 + $0x28] sm:$0xff]
          %v1447 = vld [vmem:[#allocation4 + $0x30] sm:$0xff]
          %v1448 = vld [vmem:[#allocation4 + $0x38] sm:$0xff]
          %v1449 = vld [vmem:[#allocation4 + $0x40] sm:$0xff]
          %v1450 = vld [vmem:[#allocation4 + $0x48] sm:$0xff]
          %v1451 = vld [vmem:[#allocation4 + $0x50] sm:$0xff]
          %v1452 = vld [vmem:[#allocation4 + $0x58] sm:$0xff]
          %v1453 = vld [vmem:[#allocation4 + $0x60] sm:$0xff]
          %v1454 = vld [vmem:[#allocation4 + $0x68] sm:$0xff]
          %v1455 = vld [vmem:[#allocation4 + $0x70] sm:$0xff]
          %v1456 = vld [vmem:[#allocation4 + $0x78] sm:$0xff]
          %v1457 = vld [vmem:[#allocation3] sm:$0xff]
          %v1458 = vld [vmem:[#allocation3 + $0x8] sm:$0xff]
          %v1459 = vld [vmem:[#allocation3 + $0x10] sm:$0xff]
          %v1460 = vld [vmem:[#allocation3 + $0x18] sm:$0xff]
          %v1461 = vld [vmem:[#allocation3 + $0x20] sm:$0xff]
          %v1462 = vld [vmem:[#allocation3 + $0x28] sm:$0xff]
          %v1463 = vld [vmem:[#allocation3 + $0x30] sm:$0xff]
          %v1464 = vld [vmem:[#allocation3 + $0x38] sm:$0xff]
          %v1465 = vld [vmem:[#allocation3 + $0x40] sm:$0xff]
          %v1466 = vld [vmem:[#allocation3 + $0x48] sm:$0xff]
          %v1467 = vld [vmem:[#allocation3 + $0x50] sm:$0xff]
          %v1468 = vld [vmem:[#allocation3 + $0x58] sm:$0xff]
          %v1469 = vld [vmem:[#allocation3 + $0x60] sm:$0xff]
          %v1470 = vld [vmem:[#allocation3 + $0x68] sm:$0xff]
          %v1471 = vld [vmem:[#allocation3 + $0x70] sm:$0xff]
          %v1472 = vld [vmem:[#allocation3 + $0x78] sm:$0xff]
          %1474 = vset.pattern.permute.xlu0 0
          %1475 = vperm.xlu0 %1474, %v1457
          %v1476 = vpop.permute.xlu0 %1475
          %1479 = vset.pattern.permute.xlu0 0
          %1480 = vperm.xlu0 %1479, %v1458
          %v1481 = vpop.permute.xlu0 %1480
          %1484 = vset.pattern.permute.xlu0 0
          %1485 = vperm.xlu0 %1484, %v1459
          %v1486 = vpop.permute.xlu0 %1485
          %1489 = vset.pattern.permute.xlu0 0
          %1490 = vperm.xlu0 %1489, %v1460
          %v1491 = vpop.permute.xlu0 %1490
          %1494 = vset.pattern.permute.xlu0 0
          %1495 = vperm.xlu0 %1494, %v1461
          %v1496 = vpop.permute.xlu0 %1495
          %1499 = vset.pattern.permute.xlu0 0
          %1500 = vperm.xlu0 %1499, %v1462
          %v1501 = vpop.permute.xlu0 %1500
          %1504 = vset.pattern.permute.xlu0 0
          %1505 = vperm.xlu0 %1504, %v1463
          %v1506 = vpop.permute.xlu0 %1505
          %1509 = vset.pattern.permute.xlu0 0
          %1510 = vperm.xlu0 %1509, %v1464
          %v1511 = vpop.permute.xlu0 %1510
          %1514 = vset.pattern.permute.xlu0 0
          %1515 = vperm.xlu0 %1514, %v1465
          %v1516 = vpop.permute.xlu0 %1515
          %1519 = vset.pattern.permute.xlu0 0
          %1520 = vperm.xlu0 %1519, %v1466
          %v1521 = vpop.permute.xlu0 %1520
          %1524 = vset.pattern.permute.xlu0 0
          %1525 = vperm.xlu0 %1524, %v1467
          %v1526 = vpop.permute.xlu0 %1525
          %1529 = vset.pattern.permute.xlu0 0
          %1530 = vperm.xlu0 %1529, %v1468
          %v1531 = vpop.permute.xlu0 %1530
          %1534 = vset.pattern.permute.xlu0 0
          %1535 = vperm.xlu0 %1534, %v1469
          %v1536 = vpop.permute.xlu0 %1535
          %1539 = vset.pattern.permute.xlu0 0
          %1540 = vperm.xlu0 %1539, %v1470
          %v1541 = vpop.permute.xlu0 %1540
          %1544 = vset.pattern.permute.xlu0 0
          %1545 = vperm.xlu0 %1544, %v1471
          %v1546 = vpop.permute.xlu0 %1545
          %1549 = vset.pattern.permute.xlu0 0
          %1550 = vperm.xlu0 %1549, %v1472
          %v1551 = vpop.permute.xlu0 %1550
          %v1553 = vrcp.pop %v1476
          %v1554 = vmul.f32 %v1441, %v1553
          %v1555 = vrcp.pop %v1481
          %v1556 = vmul.f32 %v1442, %v1555
          %v1557 = vrcp.pop %v1486
          %v1558 = vmul.f32 %v1443, %v1557
          %v1559 = vrcp.pop %v1491
          %v1560 = vmul.f32 %v1444, %v1559
          %v1561 = vrcp.pop %v1496
          %v1562 = vmul.f32 %v1445, %v1561
          %v1563 = vrcp.pop %v1501
          %v1564 = vmul.f32 %v1446, %v1563
          %v1565 = vrcp.pop %v1506
          %v1566 = vmul.f32 %v1447, %v1565
          %v1567 = vrcp.pop %v1511
          %v1568 = vmul.f32 %v1448, %v1567
          %v1569 = vrcp.pop %v1516
          %v1570 = vmul.f32 %v1449, %v1569
          %v1571 = vrcp.pop %v1521
          %v1572 = vmul.f32 %v1450, %v1571
          %v1573 = vrcp.pop %v1526
          %v1574 = vmul.f32 %v1451, %v1573
          %v1575 = vrcp.pop %v1531
          %v1576 = vmul.f32 %v1452, %v1575
          %v1577 = vrcp.pop %v1536
          %v1578 = vmul.f32 %v1453, %v1577
          %v1579 = vrcp.pop %v1541
          %v1580 = vmul.f32 %v1454, %v1579
          %v1581 = vrcp.pop %v1546
          %v1582 = vmul.f32 %v1455, %v1581
          %v1583 = vrcp.pop %v1551
          %v1584 = vmul.f32 %v1456, %v1583
          %1585 = vst [vmem:[%s425] sm:$0xff] %v1554
          %1586 = vst [vmem:[%s425 + $0x8] sm:$0xff] %v1556
          %1587 = vst [vmem:[%s425 + $0x10] sm:$0xff] %v1558
          %1588 = vst [vmem:[%s425 + $0x18] sm:$0xff] %v1560
          %1589 = vst [vmem:[%s425 + $0x20] sm:$0xff] %v1562
          %1590 = vst [vmem:[%s425 + $0x28] sm:$0xff] %v1564
          %1591 = vst [vmem:[%s425 + $0x30] sm:$0xff] %v1566
          %1592 = vst [vmem:[%s425 + $0x38] sm:$0xff] %v1568
          %1593 = vst [vmem:[%s425 + $0x40] sm:$0xff] %v1570
          %1594 = vst [vmem:[%s425 + $0x48] sm:$0xff] %v1572
          %1595 = vst [vmem:[%s425 + $0x50] sm:$0xff] %v1574
          %1596 = vst [vmem:[%s425 + $0x58] sm:$0xff] %v1576
          %1597 = vst [vmem:[%s425 + $0x60] sm:$0xff] %v1578
          %1598 = vst [vmem:[%s425 + $0x68] sm:$0xff] %v1580
          %1599 = vst [vmem:[%s425 + $0x70] sm:$0xff] %v1582
          %1600 = vst [vmem:[%s425 + $0x78] sm:$0xff] %v1584
          %v1601 = vld [vmem:[#allocation2] sm:$0xff]
          %v1602 = vld [vmem:[#allocation2 + $0x8] sm:$0xff]
          %v1603 = vld [vmem:[#allocation2 + $0x10] sm:$0xff]
          %v1604 = vld [vmem:[#allocation2 + $0x18] sm:$0xff]
          %v1605 = vld [vmem:[#allocation2 + $0x20] sm:$0xff]
          %v1606 = vld [vmem:[#allocation2 + $0x28] sm:$0xff]
          %v1607 = vld [vmem:[#allocation2 + $0x30] sm:$0xff]
          %v1608 = vld [vmem:[#allocation2 + $0x38] sm:$0xff]
          %v1609 = vld [vmem:[#allocation2 + $0x40] sm:$0xff]
          %v1610 = vld [vmem:[#allocation2 + $0x48] sm:$0xff]
          %v1611 = vld [vmem:[#allocation2 + $0x50] sm:$0xff]
          %v1612 = vld [vmem:[#allocation2 + $0x58] sm:$0xff]
          %v1613 = vld [vmem:[#allocation2 + $0x60] sm:$0xff]
          %v1614 = vld [vmem:[#allocation2 + $0x68] sm:$0xff]
          %v1615 = vld [vmem:[#allocation2 + $0x70] sm:$0xff]
          %v1616 = vld [vmem:[#allocation2 + $0x78] sm:$0xff]
          %v1617 = vld [vmem:[#allocation3] sm:$0xff]
          %v1618 = vld [vmem:[#allocation3 + $0x8] sm:$0xff]
          %v1619 = vld [vmem:[#allocation3 + $0x10] sm:$0xff]
          %v1620 = vld [vmem:[#allocation3 + $0x18] sm:$0xff]
          %v1621 = vld [vmem:[#allocation3 + $0x20] sm:$0xff]
          %v1622 = vld [vmem:[#allocation3 + $0x28] sm:$0xff]
          %v1623 = vld [vmem:[#allocation3 + $0x30] sm:$0xff]
          %v1624 = vld [vmem:[#allocation3 + $0x38] sm:$0xff]
          %v1625 = vld [vmem:[#allocation3 + $0x40] sm:$0xff]
          %v1626 = vld [vmem:[#allocation3 + $0x48] sm:$0xff]
          %v1627 = vld [vmem:[#allocation3 + $0x50] sm:$0xff]
          %v1628 = vld [vmem:[#allocation3 + $0x58] sm:$0xff]
          %v1629 = vld [vmem:[#allocation3 + $0x60] sm:$0xff]
          %v1630 = vld [vmem:[#allocation3 + $0x68] sm:$0xff]
          %v1631 = vld [vmem:[#allocation3 + $0x70] sm:$0xff]
          %v1632 = vld [vmem:[#allocation3 + $0x78] sm:$0xff]
          %v1633 = vlog2.pop %v1617
          %v1634 = vmul.f32 %v1633, 0.6931472
          %v1635 = vlog2.pop %v1618
          %v1636 = vmul.f32 %v1635, 0.6931472
          %v1637 = vlog2.pop %v1619
          %v1638 = vmul.f32 %v1637, 0.6931472
          %v1639 = vlog2.pop %v1620
          %v1640 = vmul.f32 %v1639, 0.6931472
          %v1641 = vlog2.pop %v1621
          %v1642 = vmul.f32 %v1641, 0.6931472
          %v1643 = vlog2.pop %v1622
          %v1644 = vmul.f32 %v1643, 0.6931472
          %v1645 = vlog2.pop %v1623
          %v1646 = vmul.f32 %v1645, 0.6931472
          %v1647 = vlog2.pop %v1624
          %v1648 = vmul.f32 %v1647, 0.6931472
          %v1649 = vlog2.pop %v1625
          %v1650 = vmul.f32 %v1649, 0.6931472
          %v1651 = vlog2.pop %v1626
          %v1652 = vmul.f32 %v1651, 0.6931472
          %v1653 = vlog2.pop %v1627
          %v1654 = vmul.f32 %v1653, 0.6931472
          %v1655 = vlog2.pop %v1628
          %v1656 = vmul.f32 %v1655, 0.6931472
          %v1657 = vlog2.pop %v1629
          %v1658 = vmul.f32 %v1657, 0.6931472
          %v1659 = vlog2.pop %v1630
          %v1660 = vmul.f32 %v1659, 0.6931472
          %v1661 = vlog2.pop %v1631
          %v1662 = vmul.f32 %v1661, 0.6931472
          %v1663 = vlog2.pop %v1632
          %v1664 = vmul.f32 %v1663, 0.6931472
          %v1665 = vadd.f32 %v1601, %v1634
          %v1666 = vadd.f32 %v1602, %v1636
          %v1667 = vadd.f32 %v1603, %v1638
          %v1668 = vadd.f32 %v1604, %v1640
          %v1669 = vadd.f32 %v1605, %v1642
          %v1670 = vadd.f32 %v1606, %v1644
          %v1671 = vadd.f32 %v1607, %v1646
          %v1672 = vadd.f32 %v1608, %v1648
          %v1673 = vadd.f32 %v1609, %v1650
          %v1674 = vadd.f32 %v1610, %v1652
          %v1675 = vadd.f32 %v1611, %v1654
          %v1676 = vadd.f32 %v1612, %v1656
          %v1677 = vadd.f32 %v1613, %v1658
          %v1678 = vadd.f32 %v1614, %v1660
          %v1679 = vadd.f32 %v1615, %v1662
          %v1680 = vadd.f32 %v1616, %v1664
          %1681 = vst.msk [vmem:[%s458] sm:$0xff] %vm1116, %v1665
          %1682 = vst.msk [vmem:[%s458 + $0x8] sm:$0xff] %vm1116, %v1666
          %1683 = vst.msk [vmem:[%s458 + $0x10] sm:$0xff] %vm1116, %v1667
          %1684 = vst.msk [vmem:[%s458 + $0x18] sm:$0xff] %vm1116, %v1668
          %1685 = vst.msk [vmem:[%s458 + $0x20] sm:$0xff] %vm1116, %v1669
          %1686 = vst.msk [vmem:[%s458 + $0x28] sm:$0xff] %vm1116, %v1670
          %1687 = vst.msk [vmem:[%s458 + $0x30] sm:$0xff] %vm1116, %v1671
          %1688 = vst.msk [vmem:[%s458 + $0x38] sm:$0xff] %vm1116, %v1672
          %1689 = vst.msk [vmem:[%s458 + $0x40] sm:$0xff] %vm1116, %v1673
          %1690 = vst.msk [vmem:[%s458 + $0x48] sm:$0xff] %vm1116, %v1674
          %1691 = vst.msk [vmem:[%s458 + $0x50] sm:$0xff] %vm1116, %v1675
          %1692 = vst.msk [vmem:[%s458 + $0x58] sm:$0xff] %vm1116, %v1676
          %1693 = vst.msk [vmem:[%s458 + $0x60] sm:$0xff] %vm1116, %v1677
          %1694 = vst.msk [vmem:[%s458 + $0x68] sm:$0xff] %vm1116, %v1678
          %1695 = vst.msk [vmem:[%s458 + $0x70] sm:$0xff] %vm1116, %v1679
          %1696 = vst.msk [vmem:[%s458 + $0x78] sm:$0xff] %vm1116, %v1680
        $region60: #{tpu_custom_call.1} parent=35 // pred_fallthru
          _
        %s1697 = sand.u32 %s187, 1
        %s1698 = scalar_lea.sflag [#allocation7], %s1697
        %s1699 = sand.u32 %s187, 1
        %s1700 = smul.addr %s1699, 128
        %s1701 = scalar_lea.vmem [#allocation13], %s1700
        %s1702 = smul.u32 16, %s37
        %p1703 = scmp.lt.s32.totalorder %s35, 1
        %s1704 = scalar_select %p1703, %s35, 1
        %p1705 = scmp.lt.s32.totalorder %s36, 3
        %s1706 = scalar_select %p1705, %s36, 3
        %p1707 = scmp.lt.s32.totalorder %s1702, 15
        %s1708 = scalar_select %p1707, %s1702, 15
        %s1709 = smul.addr %s1706, 16
        %s1710 = sadd.s32 %s1708, %s1709
        %s1711 = smul.addr %s1704, 64
        %s1712 = sadd.s32 %s1710, %s1711
        %s1713 = smul.addr %s1712, 8
        %s1714 = scalar_lea.vmem %s5, %s1713
        // Predicated region
        $region61: #{tpu_custom_call.1} parent=35 // pred_check
          %p1715 = pneg %p197
        $region62: #{tpu_custom_call.1} parent=35 // pred_check_branch
          %1717 = sbr.rel (%p1715) target = $region64
        $region63: #{tpu_custom_call.1} parent=35 // pred_region
          %s1718 = smul.u32 16, %s37
          %s1720 = ssub.s32 2048, 2048
          %1721 = vsyncadd %s1698, %s1720
          %s1722 = smul.addr %s36, 16
          %s1723 = sadd.s32 %s1718, %s1722
          %s1724 = smul.addr %s35, 64
          %s1725 = sadd.s32 %s1723, %s1724
          %s1726 = smul.addr %s1725, 128
          %s1727 = scalar_lea.hbm %s4, %s1726
          %s1728 = sshll.u32 %s1701, 4
          %s1729 = int_to_ptr.vmem [resolvable:$true] %s1728
          %1734 = dma.vmem_to_hbm [thread:$0]  %s1729, 2048, %s1727, %s1698, 128, 128, 8
        $region64: #{tpu_custom_call.1} parent=35 // pred_fallthru
          _
        // Predicated region
        $region65: #{tpu_custom_call.1} parent=35 // pred_check
          %p1735 = pneg %p227
        $region66: #{tpu_custom_call.1} parent=35 // pred_check_branch
          %1737 = sbr.rel (%p1735) target = $region68
        $region67: #{tpu_custom_call.1} parent=35 // pred_region
          %s1738 = smul.u32 16, %s37
        $region68: #{tpu_custom_call.1} parent=35 // pred_fallthru
          _
      $region36: #{tpu_custom_call.1} parent=5 // pred_fallthru
        _
      %p1739 = scmp.le.s32.totalorder 2, %s24
      // Predicated region
      $region69: #{tpu_custom_call.1} parent=5 // pred_check
        %p1740 = pneg %p1739
      $region70: #{tpu_custom_call.1} parent=5 // pred_check_branch
        %1742 = sbr.rel (%p1740) target = $region72
      $region71: #{tpu_custom_call.1} parent=5 // pred_region
        %s1743 = ssub.s32 %s24, 2
        // Predicated region
        $region73: #{tpu_custom_call.1} parent=71 // pred_check
          %p1744 = pneg %p203
        $region74: #{tpu_custom_call.1} parent=71 // pred_check_branch
          %1746 = sbr.rel (%p1744) target = $region76
        $region75: #{tpu_custom_call.1} parent=71 // pred_region
          %s1747 = sand.u32 %s188, 1
          %s1748 = scalar_lea.sflag [#allocation7], %s1747
          %s1749 = sand.u32 %s188, 1
          %s1750 = smul.addr %s1749, 128
          %s1751 = scalar_lea.vmem [#allocation13], %s1750
          %1752 = dma.done %s1748, 2048
        $region76: #{tpu_custom_call.1} parent=71 // pred_fallthru
          _
        // Predicated region
        $region77: #{tpu_custom_call.1} parent=71 // pred_check
          %p1753 = pneg %p233
        $region78: #{tpu_custom_call.1} parent=71 // pred_check_branch
          %1755 = sbr.rel (%p1753) target = $region80
        $region79: #{tpu_custom_call.1} parent=71 // pred_region
          %s1756 = smul.u32 16, %s41
          %p1757 = scmp.lt.s32.totalorder %s39, 1
          %s1758 = scalar_select %p1757, %s39, 1
          %p1759 = scmp.lt.s32.totalorder %s40, 3
          %s1760 = scalar_select %p1759, %s40, 3
          %p1761 = scmp.lt.s32.totalorder %s1756, 15
          %s1762 = scalar_select %p1761, %s1756, 15
          %s1763 = smul.addr %s1760, 16
          %s1764 = sadd.s32 %s1762, %s1763
          %s1765 = smul.addr %s1758, 64
          %s1766 = sadd.s32 %s1764, %s1765
          %s1767 = smul.addr %s1766, 8
          %s1768 = scalar_lea.vmem %s5, %s1767
        $region80: #{tpu_custom_call.1} parent=71 // pred_fallthru
          _
      $region72: #{tpu_custom_call.1} parent=5 // pred_fallthru
        _
    $region6: #{tpu_custom_call.1} parent=1 // loop_footer
      %s28 = sadd.s32 1, %s24
    $region7: #{tpu_custom_call.1} parent=1 // loop_footer_branch
      %23 = sbr.rel target = $region3
    $region8: #{tpu_custom_call.1} parent=1 // loop_exit
      _
    %1769 = vsyncpa [#allocation6], 1
    %s1770 = scalar_lea.sflag [#allocation6], 1
    %1771 = vsyncpa %s1770, 1
    %1772 = vsyncpa [#allocation9], 1
    %s1773 = scalar_lea.sflag [#allocation9], 1
    %1774 = vsyncpa %s1773, 1
    %1775 = vsyncpa [#allocation12], 1
    %s1776 = scalar_lea.sflag [#allocation12], 1
    %1777 = vsyncpa %s1776, 1
    %1778 = vsyncpa [#allocation7], 1
    %s1779 = scalar_lea.sflag [#allocation7], 1
    %1780 = vsyncpa %s1779, 1

</llo_original>
